<compile_context>
chip_gen: v7x
topology: tpu7x:2x2x1
jax: 0.10.0
libtpu: 0.0.40
codegen_flags: <defaults>
</compile_context>

<pallas_src>
import jax
import jax.numpy as jnp
from jax.experimental import pallas as pl
from jax.experimental.pallas import tpu as pltpu

IN_DIM = 512 + 768      # 1280
HID_DIM = 512


def _round_up(x, m):
    return ((x + m - 1) // m) * m


# --------------------------------------------------------------------------- #
# Kernel
# --------------------------------------------------------------------------- #
def _classification_kernel(x_ref, w1_ref, b1_ref, w2_ref, b2_ref,
                           op_ref, red_ref):
    """One batch tile: bf16 MXU matmuls with f32 accumulation, bias, tanh."""
    # Cast x f32 -> bf16 in VMEM (saves a separate wrapper-side HBM pass).
    x = x_ref[...].astype(w1_ref.dtype)                     # (bb, 1280) bf16
    # linear1: (bb, 1280) @ (1280, 512) -> f32
    h = jnp.dot(x, w1_ref[...], preferred_element_type=jnp.float32)
    reduced = jnp.tanh(h + b1_ref[...])                     # (bb, 512) f32
    red_ref[...] = reduced.astype(red_ref.dtype)
    # linear2: (bb, 512) @ (512, Npad) -> f32
    op = jnp.dot(reduced.astype(w2_ref.dtype), w2_ref[...],
                 preferred_element_type=jnp.float32)
    op_ref[...] = (op + b2_ref[...]).astype(op_ref.dtype)


# --------------------------------------------------------------------------- #
# One-time parameter preparation (do NOT redo per forward call)
# --------------------------------------------------------------------------- #
def prepare_params(w1, b1, w2, b2, *, weight_dtype=jnp.bfloat16):
    """Cast weights to bf16 and pad the answer dim to a lane multiple of 128.

    Call once and reuse the returned tuple across forward calls.
    """
    n = w2.shape[1]
    n_pad = _round_up(max(n, 128), 128)
    w1c = w1.astype(weight_dtype)                               # (1280, 512)
    b1_2d = b1.reshape(1, -1).astype(jnp.float32)               # (1, 512)
    w2p = w2 if n_pad == n else jnp.pad(w2, ((0, 0), (0, n_pad - n)))
    w2c = w2p.astype(weight_dtype)                              # (512, Npad)
    b2p = b2 if n_pad == n else jnp.pad(b2, (0, n_pad - n))
    b2_2d = b2p.reshape(1, n_pad).astype(jnp.float32)           # (1, Npad)
    return (w1c, b1_2d, w2c, b2_2d, n)


# --------------------------------------------------------------------------- #
# Forward
# --------------------------------------------------------------------------- #
def classification_forward(x, params, *, block_b=512, min_rows_per_block=64):
    """x: (B, 1280) float32; params: output of prepare_params."""
    w1c, b1_2d, w2c, b2_2d, n = params
    B, in_dim = x.shape
    hid = w1c.shape[1]
    n_pad = w2c.shape[1]

    # Batch tiling (no padding, no post-kernel batch slicing):
    #  - tiny batch:       one full-extent block (any B is legal as a full dim)
    #  - mid-size batch:   split into >=2 blocks so v7x's 2 TCs both get work
    #  - large batch:      block_b-row blocks; ragged last block handled by
    #                      Pallas (OOB reads are row-local, OOB writes dropped)
    if B <= min_rows_per_block:
        bb = B
    elif B <= 2 * block_b:
        bb = min(block_b, _round_up(pl.cdiv(B, 2), 8))
    else:
        bb = block_b
    n_blocks = pl.cdiv(B, bb)

    out_shapes = (
        jax.ShapeDtypeStruct((B, n_pad), jnp.float32),   # op (lane-padded cols)
        jax.ShapeDtypeStruct((B, hid), jnp.float32),     # reduced
    )

    bytes_accessed = (
        B * in_dim * 4                      # x (f32, cast in-kernel)
        + w1c.size * 2 + w2c.size * 2       # bf16 weights
        + b1_2d.size * 4 + b2_2d.size * 4
        + B * n_pad * 4 + B * hid * 4       # outputs
    )
    cost = pl.CostEstimate(
        flops=2 * B * in_dim * hid + 2 * B * hid * n_pad,
        transcendentals=B * hid,
        bytes_accessed=bytes_accessed,
    )

    op_full, reduced = pl.pallas_call(
        _classification_kernel,
        out_shape=out_shapes,
        grid=(n_blocks,),
        in_specs=[
            pl.BlockSpec((bb, in_dim), lambda i: (i, 0)),    # x: streams
            pl.BlockSpec((in_dim, hid), lambda i: (0, 0)),   # W1: resident
            pl.BlockSpec((1, hid), lambda i: (0, 0)),        # b1: resident
            pl.BlockSpec((hid, n_pad), lambda i: (0, 0)),    # W2: resident
            pl.BlockSpec((1, n_pad), lambda i: (0, 0)),      # b2: resident
        ],
        out_specs=(
            pl.BlockSpec((bb, n_pad), lambda i: (i, 0)),
            pl.BlockSpec((bb, hid), lambda i: (i, 0)),
        ),
        compiler_params=pltpu.CompilerParams(
            dimension_semantics=("parallel",),               # v7x: 2 TCs
        ),
        cost_estimate=cost,
    )(x, w1c, b1_2d, w2c, b2_2d)

    # Only remaining layout op: strip the lane padding on the answer dim.
    op = op_full if n_pad == n else op_full[:, :n]
    return op, reduced


# --------------------------------------------------------------------------- #
# Test scaffolding
# --------------------------------------------------------------------------- #
def init_params(key, num_answers):
    """Deterministic synthetic init (matches nn.Linear shapes, transposed)."""
    k1, k2, k3, k4 = jax.random.split(key, 4)
    lim1 = 1.0 / jnp.sqrt(jnp.float32(IN_DIM))
    lim2 = 1.0 / jnp.sqrt(jnp.float32(HID_DIM))
    w1 = jax.random.uniform(k1, (IN_DIM, HID_DIM), jnp.float32, -lim1, lim1)
    b1 = jax.random.uniform(k2, (HID_DIM,), jnp.float32, -lim1, lim1)
    w2 = jax.random.uniform(k3, (HID_DIM, num_answers), jnp.float32, -lim2, lim2)
    b2 = jax.random.uniform(k4, (num_answers,), jnp.float32, -lim2, lim2)
    return w1, b1, w2, b2


def _reference(x, w1, b1, w2, b2):
    """Plain-JAX reference with the same bf16-input / f32-accum math."""
    xb = x.astype(jnp.bfloat16)
    w1b = w1.astype(jnp.bfloat16)
    w2b = w2.astype(jnp.bfloat16)
    reduced = jnp.tanh(
        jnp.dot(xb, w1b, preferred_element_type=jnp.float32) + b1)
    op = jnp.dot(reduced.astype(jnp.bfloat16), w2b,
                 preferred_element_type=jnp.float32) + b2
    return op, reduced


if __name__ == "__main__":
    key = jax.random.PRNGKey(0)
    k_params, k_x1, k_x2, k_x3 = jax.random.split(key, 4)

    num_answers = 16
    w1, b1, w2, b2 = init_params(k_params, num_answers)
    params = prepare_params(w1, b1, w2, b2)   # one-time bf16 / lane-pad prep

    # --- small batch: single full-extent block -------------------------------
    batch = 8
    x = jax.random.normal(k_x1, (batch, IN_DIM), jnp.float32)
    op, reduced = classification_forward(x, params)
    jax.block_until_ready((op, reduced))

    ref_op, ref_reduced = _reference(x, w1, b1, w2, b2)
    assert op.shape == (batch, num_answers)
    assert reduced.shape == (batch, HID_DIM)
    assert jnp.allclose(op, ref_op, atol=2e-3, rtol=2e-3)
    assert jnp.allclose(reduced, ref_reduced, atol=2e-3, rtol=2e-3)
    # Sanity vs. full-f32 math (bf16 weights introduce only small error).
    f32_reduced = jnp.tanh(x @ w1 + b1)
    f32_op = f32_reduced @ w2 + b2
    assert jnp.allclose(op, f32_op, atol=5e-2, rtol=5e-2)
    assert jnp.allclose(reduced, f32_reduced, atol=5e-2, rtol=5e-2)

    # --- mid-size batch: 2-block split (v7x megacore path) + ragged last block
    batch2 = 100
    x2 = jax.random.normal(k_x2, (batch2, IN_DIM), jnp.float32)
    op2, reduced2 = classification_forward(x2, params)
    jax.block_until_ready((op2, reduced2))
    ref_op2, ref_reduced2 = _reference(x2, w1, b1, w2, b2)
    assert op2.shape == (batch2, num_answers)
    assert reduced2.shape == (batch2, HID_DIM)
    assert jnp.allclose(op2, ref_op2, atol=2e-3, rtol=2e-3)
    assert jnp.allclose(reduced2, ref_reduced2, atol=2e-3, rtol=2e-3)

    # --- larger non-multiple batch: multi-block grid + ragged last block -----
    batch3 = 300
    x3 = jax.random.normal(k_x3, (batch3, IN_DIM), jnp.float32)
    op3, reduced3 = classification_forward(x3, params, block_b=128)
    jax.block_until_ready((op3, reduced3))
    ref_op3, ref_reduced3 = _reference(x3, w1, b1, w2, b2)
    assert op3.shape == (batch3, num_answers)
    assert reduced3.shape == (batch3, HID_DIM)
    assert jnp.allclose(op3, ref_op3, atol=2e-3, rtol=2e-3)
    assert jnp.allclose(reduced3, ref_reduced3, atol=2e-3, rtol=2e-3)

    print("KERNEL_OK")
</pallas_src>

<mosaic_0001>
module attributes {stable_mosaic.version = 11 : i64} {
  func.func @_classification_kernel(%arg0: i32, %arg1: memref<8x1280xf32, #tpu.memory_space<vmem>>, %arg2: memref<1280x512xbf16, #tpu.memory_space<vmem>>, %arg3: memref<1x512xf32, #tpu.memory_space<vmem>>, %arg4: memref<512x128xbf16, #tpu.memory_space<vmem>>, %arg5: memref<1x128xf32, #tpu.memory_space<vmem>>, %arg6: memref<8x128xf32, #tpu.memory_space<vmem>>, %arg7: memref<8x512xf32, #tpu.memory_space<vmem>>) attributes {dimension_semantics = [#tpu.dimension_semantics<parallel>], iteration_bounds = array<i64: 1>, scalar_prefetch = 0 : i64, scratch_operands = 0 : i64, tpu.core_type = #tpu.core_type<tc>, window_params = [{transform_indices = @transform_0, window_bounds = array<i64: 8, 1280>}, {pipeline_mode = #tpu.pipeline_mode<synchronous>, transform_indices = @transform_1, window_bounds = array<i64: 1280, 512>}, {pipeline_mode = #tpu.pipeline_mode<synchronous>, transform_indices = @transform_2, window_bounds = array<i64: 1, 512>}, {pipeline_mode = #tpu.pipeline_mode<synchronous>, transform_indices = @transform_3, window_bounds = array<i64: 512, 128>}, {pipeline_mode = #tpu.pipeline_mode<synchronous>, transform_indices = @transform_4, window_bounds = array<i64: 1, 128>}, {transform_indices = @transform_5, window_bounds = array<i64: 8, 128>}, {transform_indices = @transform_6, window_bounds = array<i64: 8, 512>}]} {
    %c0 = arith.constant 0 : index
    %c0_0 = arith.constant 0 : index
    %0 = vector.load %arg1[%c0, %c0_0] : memref<8x1280xf32, #tpu.memory_space<vmem>>, vector<8x1280xf32>
    %1 = arith.truncf %0 : vector<8x1280xf32> to vector<8x1280xbf16>
    %c0_1 = arith.constant 0 : index
    %c0_2 = arith.constant 0 : index
    %2 = vector.load %arg2[%c0_1, %c0_2] : memref<1280x512xbf16, #tpu.memory_space<vmem>>, vector<1280x512xbf16>
    %cst = arith.constant dense<0.000000e+00> : vector<8x512xf32>
    %3 = tpu.matmul %1, %2, %cst {dimension_numbers = #tpu.dot_dimension_numbers<[1], [0], [0], [1], [0, 0, 1, 1], [], []>} : vector<8x1280xbf16>, vector<1280x512xbf16>, vector<8x512xf32> -> vector<8x512xf32>
    %c0_3 = arith.constant 0 : index
    %c0_4 = arith.constant 0 : index
    %4 = vector.load %arg3[%c0_3, %c0_4] : memref<1x512xf32, #tpu.memory_space<vmem>>, vector<1x512xf32>
    %5 = vector.broadcast %4 : vector<1x512xf32> to vector<8x512xf32>
    %6 = arith.addf %3, %5 : vector<8x512xf32>
    %7 = math.tanh %6 : vector<8x512xf32>
    %c0_5 = arith.constant 0 : index
    %c0_6 = arith.constant 0 : index
    %8 = vector.load %arg7[%c0_5, %c0_6] : memref<8x512xf32, #tpu.memory_space<vmem>>, vector<8x512xf32>
    tpu.vector_store %arg7[%c0_5, %c0_6], %7 {strides = array<i32>} : memref<8x512xf32, #tpu.memory_space<vmem>>, vector<8x512xf32>,
    %9 = arith.truncf %7 : vector<8x512xf32> to vector<8x512xbf16>
    %c0_7 = arith.constant 0 : index
    %c0_8 = arith.constant 0 : index
    %10 = vector.load %arg4[%c0_7, %c0_8] : memref<512x128xbf16, #tpu.memory_space<vmem>>, vector<512x128xbf16>
    %cst_9 = arith.constant dense<0.000000e+00> : vector<8x128xf32>
    %11 = tpu.matmul %9, %10, %cst_9 {dimension_numbers = #tpu.dot_dimension_numbers<[1], [0], [0], [1], [0, 0, 1, 1], [], []>} : vector<8x512xbf16>, vector<512x128xbf16>, vector<8x128xf32> -> vector<8x128xf32>
    %c0_10 = arith.constant 0 : index
    %c0_11 = arith.constant 0 : index
    %12 = vector.load %arg5[%c0_10, %c0_11] : memref<1x128xf32, #tpu.memory_space<vmem>>, vector<1x128xf32>
    %13 = vector.broadcast %12 : vector<1x128xf32> to vector<8x128xf32>
    %14 = arith.addf %11, %13 : vector<8x128xf32>
    %c0_12 = arith.constant 0 : index
    %c0_13 = arith.constant 0 : index
    %15 = vector.load %arg6[%c0_12, %c0_13] : memref<8x128xf32, #tpu.memory_space<vmem>>, vector<8x128xf32>
    tpu.vector_store %arg6[%c0_12, %c0_13], %14 {strides = array<i32>} : memref<8x128xf32, #tpu.memory_space<vmem>>, vector<8x128xf32>,
    return
  }
  func.func @transform_0(%arg0: i32) -> (i32, i32) {
    %c0_i32 = arith.constant 0 : i32
    %c0_i32_0 = arith.constant 0 : i32
    return %arg0, %c0_i32 : i32, i32
  }
  func.func @transform_1(%arg0: i32) -> (i32, i32) {
    %c0_i32 = arith.constant 0 : i32
    %c0_i32_0 = arith.constant 0 : i32
    %c0_i32_1 = arith.constant 0 : i32
    return %c0_i32, %c0_i32_0 : i32, i32
  }
  func.func @transform_2(%arg0: i32) -> (i32, i32) {
    %c0_i32 = arith.constant 0 : i32
    %c0_i32_0 = arith.constant 0 : i32
    %c0_i32_1 = arith.constant 0 : i32
    return %c0_i32, %c0_i32_0 : i32, i32
  }
  func.func @transform_3(%arg0: i32) -> (i32, i32) {
    %c0_i32 = arith.constant 0 : i32
    %c0_i32_0 = arith.constant 0 : i32
    %c0_i32_1 = arith.constant 0 : i32
    return %c0_i32, %c0_i32_0 : i32, i32
  }
  func.func @transform_4(%arg0: i32) -> (i32, i32) {
    %c0_i32 = arith.constant 0 : i32
    %c0_i32_0 = arith.constant 0 : i32
    %c0_i32_1 = arith.constant 0 : i32
    return %c0_i32, %c0_i32_0 : i32, i32
  }
  func.func @transform_5(%arg0: i32) -> (i32, i32) {
    %c0_i32 = arith.constant 0 : i32
    %c0_i32_0 = arith.constant 0 : i32
    return %arg0, %c0_i32 : i32, i32
  }
  func.func @transform_6(%arg0: i32) -> (i32, i32) {
    %c0_i32 = arith.constant 0 : i32
    %c0_i32_0 = arith.constant 0 : i32
    return %arg0, %c0_i32 : i32, i32
  }
}

</mosaic_0001>

<llo_original>
// kernel: tpu_custom_call.1
$region0: #{tpu_custom_call.1}
  #allocation0 [shape = 'u32[]', space=smem, size = 0x4, offset = 0x4, fixed_abs, tag = 'smem constant byte address 0x4 - core index']
  #allocation1 [shape = 'u32[144,128]{1,0:T(1,128)}', space=vmem, size = 0x12000, scoped, tag = 'internal scratch']
  %s0 = inlined_call_operand.hbm [shape: f32[8,1280], index: 0, kind: input, shape index: {}]
  %s1 = inlined_call_operand.hbm [shape: bf16[1280,512], index: 1, kind: input, shape index: {}]
  %s2 = inlined_call_operand.hbm [shape: f32[1,512], index: 2, kind: input, shape index: {}]
  %s3 = inlined_call_operand.hbm [shape: bf16[512,128], index: 3, kind: input, shape index: {}]
  %s4 = inlined_call_operand.hbm [shape: f32[1,128], index: 4, kind: input, shape index: {}]
  %s5 = inlined_call_operand.hbm [shape: f32[8,128], index: 5, kind: output, shape index: {0}]
  %s6 = inlined_call_operand.hbm [shape: f32[8,512], index: 6, kind: output, shape index: {1}]
  %7 = xla_tuple %s5, %s6
  %s8 = sld [smem:[#allocation0]]
  $region58: #{tpu_custom_call.1} parent=0
    _
  %s10 = ssub.s32 1, %s8
  %s11 = scalar_select 0, %s10, %s8
  $region1: #{tpu_custom_call.1} parent=0
    #allocation2 [shape = 'u8[40960]{0}', space=vmem, size = 0xa000, scoped, tag = 'input window, operand 0, single buffered']
    #allocation3 [shape = 's32[1]{0}', space=sflag, size = 0x4, scoped, tag = 'scoped memory for tpu_custom_call.1']
    #allocation4 [shape = 's32[1]{0}', space=sflag, size = 0x4, scoped, tag = 'scoped memory for tpu_custom_call.1']
    #allocation5 [shape = 'u8[1310720]{0}', space=vmem, size = 0x140000, scoped, tag = 'input window, operand 1, single buffered']
    #allocation6 [shape = 's32[1]{0}', space=sflag, size = 0x4, scoped, tag = 'scoped memory for tpu_custom_call.1']
    #allocation7 [shape = 'u8[2048]{0}', space=vmem, size = 0x800, scoped, tag = 'input window, operand 2, single buffered']
    #allocation8 [shape = 'u8[131072]{0}', space=vmem, size = 0x20000, scoped, tag = 'input window, operand 3, single buffered']
    #allocation9 [shape = 's32[1]{0}', space=sflag, size = 0x4, scoped, tag = 'scoped memory for tpu_custom_call.1']
    #allocation10 [shape = 'u8[512]{0}', space=vmem, size = 0x400, scoped, tag = 'input window, operand 4, single buffered']
    #allocation11 [shape = 'u8[4096]{0}', space=vmem, size = 0x1000, scoped, tag = 'output window, operand 0, single buffered']
    #allocation12 [shape = 'u8[16384]{0}', space=vmem, size = 0x4000, scoped, tag = 'output window, operand 1, single buffered']
    #allocation13 [shape = 's32[1]{0}', space=sflag, size = 0x4, scoped, tag = 'scoped memory for tpu_custom_call.1']
    %12 = vsyncpa [#allocation3], 0
    %13 = vsyncpa [#allocation6], 0
    %14 = vsyncpa [#allocation9], 0
    %15 = vsyncpa [#allocation4], 0
    %16 = vsyncpa [#allocation13], 0
    // Predicated region
    $region2: #{tpu_custom_call.1} parent=1 // pred_check
      _
    $region3: #{tpu_custom_call.1} parent=1 // pred_check_branch
      %18 = sbr.rel (0) target = $region5
    $region4: #{tpu_custom_call.1} parent=1 // pred_region
      %s20 = ssub.s32 1280, 1280
      %21 = vsyncadd [#allocation3], %s20
      %s23 = sshll.u32 [#allocation2], 4
      %s24 = int_to_ptr.vmem [resolvable:$true] %s23
      %26 = dma.hbm_to_vmem [thread:$0]  %s0, 1280, %s24, [#allocation3]
    $region5: #{tpu_custom_call.1} parent=1 // pred_fallthru
      _
    // Predicated region
    $region6: #{tpu_custom_call.1} parent=1 // pred_check
      _
    $region7: #{tpu_custom_call.1} parent=1 // pred_check_branch
      %28 = sbr.rel (0) target = $region9
    $region8: #{tpu_custom_call.1} parent=1 // pred_region
      %s30 = ssub.s32 40960, 40960
      %31 = vsyncadd [#allocation6], %s30
      %s32 = sshll.u32 [#allocation5], 4
      %s33 = int_to_ptr.vmem [resolvable:$true] %s32
      %38 = dma.hbm_to_vmem [thread:$0]  %s1, 40960, %s33, [#allocation6], 256, 256, 16
    $region9: #{tpu_custom_call.1} parent=1 // pred_fallthru
      _
    // Predicated region
    $region10: #{tpu_custom_call.1} parent=1 // pred_check
      _
    $region11: #{tpu_custom_call.1} parent=1 // pred_check_branch
      %40 = sbr.rel (0) target = $region13
    $region12: #{tpu_custom_call.1} parent=1 // pred_region
      %s42 = ssub.s32 64, 64
      %43 = vsyncadd [#allocation6], %s42
      %s45 = sshll.u32 [#allocation7], 4
      %s46 = int_to_ptr.vmem [resolvable:$true] %s45
      %48 = dma.hbm_to_vmem [thread:$0]  %s2, 64, %s46, [#allocation6]
    $region13: #{tpu_custom_call.1} parent=1 // pred_fallthru
      _
    // Predicated region
    $region14: #{tpu_custom_call.1} parent=1 // pred_check
      _
    $region15: #{tpu_custom_call.1} parent=1 // pred_check_branch
      %50 = sbr.rel (0) target = $region17
    $region16: #{tpu_custom_call.1} parent=1 // pred_region
      %s52 = ssub.s32 4096, 4096
      %53 = vsyncadd [#allocation9], %s52
      %s54 = sshll.u32 [#allocation8], 4
      %s55 = int_to_ptr.vmem [resolvable:$true] %s54
      %60 = dma.hbm_to_vmem [thread:$0]  %s3, 4096, %s55, [#allocation9], 64, 64, 4
    $region17: #{tpu_custom_call.1} parent=1 // pred_fallthru
      _
    // Predicated region
    $region18: #{tpu_custom_call.1} parent=1 // pred_check
      _
    $region19: #{tpu_custom_call.1} parent=1 // pred_check_branch
      %62 = sbr.rel (0) target = $region21
    $region20: #{tpu_custom_call.1} parent=1 // pred_region
      %s64 = ssub.s32 16, 16
      %65 = vsyncadd [#allocation9], %s64
      %s67 = sshll.u32 [#allocation10], 4
      %s68 = int_to_ptr.vmem [resolvable:$true] %s67
      %70 = dma.hbm_to_vmem [thread:$0]  %s4, 16, %s68, [#allocation9]
    $region21: #{tpu_custom_call.1} parent=1 // pred_fallthru
      _
    // Predicated region
    $region22: #{tpu_custom_call.1} parent=1 // pred_check
      _
    $region23: #{tpu_custom_call.1} parent=1 // pred_check_branch
      %72 = sbr.rel (0) target = $region25
    $region24: #{tpu_custom_call.1} parent=1 // pred_region
      %73 = dma.done [#allocation3], 1280
    $region25: #{tpu_custom_call.1} parent=1 // pred_fallthru
      _
    // Predicated region
    $region26: #{tpu_custom_call.1} parent=1 // pred_check
      _
    $region27: #{tpu_custom_call.1} parent=1 // pred_check_branch
      %75 = sbr.rel (0) target = $region29
    $region28: #{tpu_custom_call.1} parent=1 // pred_region
      %76 = dma.done [#allocation6], 40960
    $region29: #{tpu_custom_call.1} parent=1 // pred_fallthru
      _
    // Predicated region
    $region30: #{tpu_custom_call.1} parent=1 // pred_check
      _
    $region31: #{tpu_custom_call.1} parent=1 // pred_check_branch
      %78 = sbr.rel (0) target = $region33
    $region32: #{tpu_custom_call.1} parent=1 // pred_region
      %79 = dma.done [#allocation6], 64
    $region33: #{tpu_custom_call.1} parent=1 // pred_fallthru
      _
    // Predicated region
    $region34: #{tpu_custom_call.1} parent=1 // pred_check
      _
    $region35: #{tpu_custom_call.1} parent=1 // pred_check_branch
      %81 = sbr.rel (0) target = $region37
    $region36: #{tpu_custom_call.1} parent=1 // pred_region
      %82 = dma.done [#allocation9], 4096
    $region37: #{tpu_custom_call.1} parent=1 // pred_fallthru
      _
    // Predicated region
    $region38: #{tpu_custom_call.1} parent=1 // pred_check
      _
    $region39: #{tpu_custom_call.1} parent=1 // pred_check_branch
      %84 = sbr.rel (0) target = $region41
    $region40: #{tpu_custom_call.1} parent=1 // pred_region
      %85 = dma.done [#allocation9], 16
    $region41: #{tpu_custom_call.1} parent=1 // pred_fallthru
      _
    %v87 = vld [vmem:[#allocation2] sm:$0xff]
    %v88 = vld [vmem:[#allocation2 + $0x8] sm:$0xff]
    %v89 = vld [vmem:[#allocation2 + $0x10] sm:$0xff]
    %v90 = vld [vmem:[#allocation2 + $0x18] sm:$0xff]
    %v91 = vld [vmem:[#allocation2 + $0x20] sm:$0xff]
    %v92 = vld [vmem:[#allocation2 + $0x28] sm:$0xff]
    %v93 = vld [vmem:[#allocation2 + $0x30] sm:$0xff]
    %v94 = vld [vmem:[#allocation2 + $0x38] sm:$0xff]
    %v95 = vld [vmem:[#allocation2 + $0x40] sm:$0xff]
    %v96 = vld [vmem:[#allocation2 + $0x48] sm:$0xff]
    %v97 = vpack.c.bf16 %v87, %v87
    %v98 = vpack.c.bf16 %v88, %v88
    %v99 = vpack.c.bf16 %v89, %v89
    %v100 = vpack.c.bf16 %v90, %v90
    %v101 = vpack.c.bf16 %v91, %v91
    %v102 = vpack.c.bf16 %v92, %v92
    %v103 = vpack.c.bf16 %v93, %v93
    %v104 = vpack.c.bf16 %v94, %v94
    %v105 = vpack.c.bf16 %v95, %v95
    %v106 = vpack.c.bf16 %v96, %v96
    %v107 = vld [vmem:[#allocation5] sm:$0xff]
    %v108 = vld [vmem:[#allocation5 + $0x8] sm:$0xff]
    %v109 = vld [vmem:[#allocation5 + $0x10] sm:$0xff]
    %v110 = vld [vmem:[#allocation5 + $0x18] sm:$0xff]
    %v111 = vld [vmem:[#allocation5 + $0x20] sm:$0xff]
    %v112 = vld [vmem:[#allocation5 + $0x28] sm:$0xff]
    %v113 = vld [vmem:[#allocation5 + $0x30] sm:$0xff]
    %v114 = vld [vmem:[#allocation5 + $0x38] sm:$0xff]
    %v115 = vld [vmem:[#allocation5 + $0x40] sm:$0xff]
    %v116 = vld [vmem:[#allocation5 + $0x48] sm:$0xff]
    %v117 = vld [vmem:[#allocation5 + $0x50] sm:$0xff]
    %v118 = vld [vmem:[#allocation5 + $0x58] sm:$0xff]
    %v119 = vld [vmem:[#allocation5 + $0x60] sm:$0xff]
    %v120 = vld [vmem:[#allocation5 + $0x68] sm:$0xff]
    %v121 = vld [vmem:[#allocation5 + $0x70] sm:$0xff]
    %v122 = vld [vmem:[#allocation5 + $0x78] sm:$0xff]
    %v123 = vld [vmem:[#allocation5 + $0x80] sm:$0xff]
    %v124 = vld [vmem:[#allocation5 + $0x88] sm:$0xff]
    %v125 = vld [vmem:[#allocation5 + $0x90] sm:$0xff]
    %v126 = vld [vmem:[#allocation5 + $0x98] sm:$0xff]
    %v127 = vld [vmem:[#allocation5 + $0xa0] sm:$0xff]
    %v128 = vld [vmem:[#allocation5 + $0xa8] sm:$0xff]
    %v129 = vld [vmem:[#allocation5 + $0xb0] sm:$0xff]
    %v130 = vld [vmem:[#allocation5 + $0xb8] sm:$0xff]
    %v131 = vld [vmem:[#allocation5 + $0xc0] sm:$0xff]
    %v132 = vld [vmem:[#allocation5 + $0xc8] sm:$0xff]
    %v133 = vld [vmem:[#allocation5 + $0xd0] sm:$0xff]
    %v134 = vld [vmem:[#allocation5 + $0xd8] sm:$0xff]
    %v135 = vld [vmem:[#allocation5 + $0xe0] sm:$0xff]
    %v136 = vld [vmem:[#allocation5 + $0xe8] sm:$0xff]
    %v137 = vld [vmem:[#allocation5 + $0xf0] sm:$0xff]
    %v138 = vld [vmem:[#allocation5 + $0xf8] sm:$0xff]
    %v139 = vld [vmem:[#allocation5 + $0x100] sm:$0xff]
    %v140 = vld [vmem:[#allocation5 + $0x108] sm:$0xff]
    %v141 = vld [vmem:[#allocation5 + $0x110] sm:$0xff]
    %v142 = vld [vmem:[#allocation5 + $0x118] sm:$0xff]
    %v143 = vld [vmem:[#allocation5 + $0x120] sm:$0xff]
    %v144 = vld [vmem:[#allocation5 + $0x128] sm:$0xff]
    %v145 = vld [vmem:[#allocation5 + $0x130] sm:$0xff]
    %v146 = vld [vmem:[#allocation5 + $0x138] sm:$0xff]
    %v147 = vld [vmem:[#allocation5 + $0x140] sm:$0xff]
    %v148 = vld [vmem:[#allocation5 + $0x148] sm:$0xff]
    %v149 = vld [vmem:[#allocation5 + $0x150] sm:$0xff]
    %v150 = vld [vmem:[#allocation5 + $0x158] sm:$0xff]
    %v151 = vld [vmem:[#allocation5 + $0x160] sm:$0xff]
    %v152 = vld [vmem:[#allocation5 + $0x168] sm:$0xff]
    %v153 = vld [vmem:[#allocation5 + $0x170] sm:$0xff]
    %v154 = vld [vmem:[#allocation5 + $0x178] sm:$0xff]
    %v155 = vld [vmem:[#allocation5 + $0x180] sm:$0xff]
    %v156 = vld [vmem:[#allocation5 + $0x188] sm:$0xff]
    %v157 = vld [vmem:[#allocation5 + $0x190] sm:$0xff]
    %v158 = vld [vmem:[#allocation5 + $0x198] sm:$0xff]
    %v159 = vld [vmem:[#allocation5 + $0x1a0] sm:$0xff]
    %v160 = vld [vmem:[#allocation5 + $0x1a8] sm:$0xff]
    %v161 = vld [vmem:[#allocation5 + $0x1b0] sm:$0xff]
    %v162 = vld [vmem:[#allocation5 + $0x1b8] sm:$0xff]
    %v163 = vld [vmem:[#allocation5 + $0x1c0] sm:$0xff]
    %v164 = vld [vmem:[#allocation5 + $0x1c8] sm:$0xff]
    %v165 = vld [vmem:[#allocation5 + $0x1d0] sm:$0xff]
    %v166 = vld [vmem:[#allocation5 + $0x1d8] sm:$0xff]
    %v167 = vld [vmem:[#allocation5 + $0x1e0] sm:$0xff]
    %v168 = vld [vmem:[#allocation5 + $0x1e8] sm:$0xff]
    %v169 = vld [vmem:[#allocation5 + $0x1f0] sm:$0xff]
    %v170 = vld [vmem:[#allocation5 + $0x1f8] sm:$0xff]
    %v171 = vld [vmem:[#allocation5 + $0x200] sm:$0xff]
    %v172 = vld [vmem:[#allocation5 + $0x208] sm:$0xff]
    %v173 = vld [vmem:[#allocation5 + $0x210] sm:$0xff]
    %v174 = vld [vmem:[#allocation5 + $0x218] sm:$0xff]
    %v175 = vld [vmem:[#allocation5 + $0x220] sm:$0xff]
    %v176 = vld [vmem:[#allocation5 + $0x228] sm:$0xff]
    %v177 = vld [vmem:[#allocation5 + $0x230] sm:$0xff]
    %v178 = vld [vmem:[#allocation5 + $0x238] sm:$0xff]
    %v179 = vld [vmem:[#allocation5 + $0x240] sm:$0xff]
    %v180 = vld [vmem:[#allocation5 + $0x248] sm:$0xff]
    %v181 = vld [vmem:[#allocation5 + $0x250] sm:$0xff]
    %v182 = vld [vmem:[#allocation5 + $0x258] sm:$0xff]
    %v183 = vld [vmem:[#allocation5 + $0x260] sm:$0xff]
    %v184 = vld [vmem:[#allocation5 + $0x268] sm:$0xff]
    %v185 = vld [vmem:[#allocation5 + $0x270] sm:$0xff]
    %v186 = vld [vmem:[#allocation5 + $0x278] sm:$0xff]
    %v187 = vld [vmem:[#allocation5 + $0x280] sm:$0xff]
    %v188 = vld [vmem:[#allocation5 + $0x288] sm:$0xff]
    %v189 = vld [vmem:[#allocation5 + $0x290] sm:$0xff]
    %v190 = vld [vmem:[#allocation5 + $0x298] sm:$0xff]
    %v191 = vld [vmem:[#allocation5 + $0x2a0] sm:$0xff]
    %v192 = vld [vmem:[#allocation5 + $0x2a8] sm:$0xff]
    %v193 = vld [vmem:[#allocation5 + $0x2b0] sm:$0xff]
    %v194 = vld [vmem:[#allocation5 + $0x2b8] sm:$0xff]
    %v195 = vld [vmem:[#allocation5 + $0x2c0] sm:$0xff]
    %v196 = vld [vmem:[#allocation5 + $0x2c8] sm:$0xff]
    %v197 = vld [vmem:[#allocation5 + $0x2d0] sm:$0xff]
    %v198 = vld [vmem:[#allocation5 + $0x2d8] sm:$0xff]
    %v199 = vld [vmem:[#allocation5 + $0x2e0] sm:$0xff]
    %v200 = vld [vmem:[#allocation5 + $0x2e8] sm:$0xff]
    %v201 = vld [vmem:[#allocation5 + $0x2f0] sm:$0xff]
    %v202 = vld [vmem:[#allocation5 + $0x2f8] sm:$0xff]
    %v203 = vld [vmem:[#allocation5 + $0x300] sm:$0xff]
    %v204 = vld [vmem:[#allocation5 + $0x308] sm:$0xff]
    %v205 = vld [vmem:[#allocation5 + $0x310] sm:$0xff]
    %v206 = vld [vmem:[#allocation5 + $0x318] sm:$0xff]
    %v207 = vld [vmem:[#allocation5 + $0x320] sm:$0xff]
    %v208 = vld [vmem:[#allocation5 + $0x328] sm:$0xff]
    %v209 = vld [vmem:[#allocation5 + $0x330] sm:$0xff]
    %v210 = vld [vmem:[#allocation5 + $0x338] sm:$0xff]
    %v211 = vld [vmem:[#allocation5 + $0x340] sm:$0xff]
    %v212 = vld [vmem:[#allocation5 + $0x348] sm:$0xff]
    %v213 = vld [vmem:[#allocation5 + $0x350] sm:$0xff]
    %v214 = vld [vmem:[#allocation5 + $0x358] sm:$0xff]
    %v215 = vld [vmem:[#allocation5 + $0x360] sm:$0xff]
    %v216 = vld [vmem:[#allocation5 + $0x368] sm:$0xff]
    %v217 = vld [vmem:[#allocation5 + $0x370] sm:$0xff]
    %v218 = vld [vmem:[#allocation5 + $0x378] sm:$0xff]
    %v219 = vld [vmem:[#allocation5 + $0x380] sm:$0xff]
    %v220 = vld [vmem:[#allocation5 + $0x388] sm:$0xff]
    %v221 = vld [vmem:[#allocation5 + $0x390] sm:$0xff]
    %v222 = vld [vmem:[#allocation5 + $0x398] sm:$0xff]
    %v223 = vld [vmem:[#allocation5 + $0x3a0] sm:$0xff]
    %v224 = vld [vmem:[#allocation5 + $0x3a8] sm:$0xff]
    %v225 = vld [vmem:[#allocation5 + $0x3b0] sm:$0xff]
    %v226 = vld [vmem:[#allocation5 + $0x3b8] sm:$0xff]
    %v227 = vld [vmem:[#allocation5 + $0x3c0] sm:$0xff]
    %v228 = vld [vmem:[#allocation5 + $0x3c8] sm:$0xff]
    %v229 = vld [vmem:[#allocation5 + $0x3d0] sm:$0xff]
    %v230 = vld [vmem:[#allocation5 + $0x3d8] sm:$0xff]
    %v231 = vld [vmem:[#allocation5 + $0x3e0] sm:$0xff]
    %v232 = vld [vmem:[#allocation5 + $0x3e8] sm:$0xff]
    %v233 = vld [vmem:[#allocation5 + $0x3f0] sm:$0xff]
    %v234 = vld [vmem:[#allocation5 + $0x3f8] sm:$0xff]
    %v235 = vld [vmem:[#allocation5 + $0x400] sm:$0xff]
    %v236 = vld [vmem:[#allocation5 + $0x408] sm:$0xff]
    %v237 = vld [vmem:[#allocation5 + $0x410] sm:$0xff]
    %v238 = vld [vmem:[#allocation5 + $0x418] sm:$0xff]
    %v239 = vld [vmem:[#allocation5 + $0x420] sm:$0xff]
    %v240 = vld [vmem:[#allocation5 + $0x428] sm:$0xff]
    %v241 = vld [vmem:[#allocation5 + $0x430] sm:$0xff]
    %v242 = vld [vmem:[#allocation5 + $0x438] sm:$0xff]
    %v243 = vld [vmem:[#allocation5 + $0x440] sm:$0xff]
    %v244 = vld [vmem:[#allocation5 + $0x448] sm:$0xff]
    %v245 = vld [vmem:[#allocation5 + $0x450] sm:$0xff]
    %v246 = vld [vmem:[#allocation5 + $0x458] sm:$0xff]
    %v247 = vld [vmem:[#allocation5 + $0x460] sm:$0xff]
    %v248 = vld [vmem:[#allocation5 + $0x468] sm:$0xff]
    %v249 = vld [vmem:[#allocation5 + $0x470] sm:$0xff]
    %v250 = vld [vmem:[#allocation5 + $0x478] sm:$0xff]
    %v251 = vld [vmem:[#allocation5 + $0x480] sm:$0xff]
    %v252 = vld [vmem:[#allocation5 + $0x488] sm:$0xff]
    %v253 = vld [vmem:[#allocation5 + $0x490] sm:$0xff]
    %v254 = vld [vmem:[#allocation5 + $0x498] sm:$0xff]
    %v255 = vld [vmem:[#allocation5 + $0x4a0] sm:$0xff]
    %v256 = vld [vmem:[#allocation5 + $0x4a8] sm:$0xff]
    %v257 = vld [vmem:[#allocation5 + $0x4b0] sm:$0xff]
    %v258 = vld [vmem:[#allocation5 + $0x4b8] sm:$0xff]
    %v259 = vld [vmem:[#allocation5 + $0x4c0] sm:$0xff]
    %v260 = vld [vmem:[#allocation5 + $0x4c8] sm:$0xff]
    %v261 = vld [vmem:[#allocation5 + $0x4d0] sm:$0xff]
    %v262 = vld [vmem:[#allocation5 + $0x4d8] sm:$0xff]
    %v263 = vld [vmem:[#allocation5 + $0x4e0] sm:$0xff]
    %v264 = vld [vmem:[#allocation5 + $0x4e8] sm:$0xff]
    %v265 = vld [vmem:[#allocation5 + $0x4f0] sm:$0xff]
    %v266 = vld [vmem:[#allocation5 + $0x4f8] sm:$0xff]
    %v267 = vld [vmem:[#allocation5 + $0x500] sm:$0xff]
    %v268 = vld [vmem:[#allocation5 + $0x508] sm:$0xff]
    %v269 = vld [vmem:[#allocation5 + $0x510] sm:$0xff]
    %v270 = vld [vmem:[#allocation5 + $0x518] sm:$0xff]
    %v271 = vld [vmem:[#allocation5 + $0x520] sm:$0xff]
    %v272 = vld [vmem:[#allocation5 + $0x528] sm:$0xff]
    %v273 = vld [vmem:[#allocation5 + $0x530] sm:$0xff]
    %v274 = vld [vmem:[#allocation5 + $0x538] sm:$0xff]
    %v275 = vld [vmem:[#allocation5 + $0x540] sm:$0xff]
    %v276 = vld [vmem:[#allocation5 + $0x548] sm:$0xff]
    %v277 = vld [vmem:[#allocation5 + $0x550] sm:$0xff]
    %v278 = vld [vmem:[#allocation5 + $0x558] sm:$0xff]
    %v279 = vld [vmem:[#allocation5 + $0x560] sm:$0xff]
    %v280 = vld [vmem:[#allocation5 + $0x568] sm:$0xff]
    %v281 = vld [vmem:[#allocation5 + $0x570] sm:$0xff]
    %v282 = vld [vmem:[#allocation5 + $0x578] sm:$0xff]
    %v283 = vld [vmem:[#allocation5 + $0x580] sm:$0xff]
    %v284 = vld [vmem:[#allocation5 + $0x588] sm:$0xff]
    %v285 = vld [vmem:[#allocation5 + $0x590] sm:$0xff]
    %v286 = vld [vmem:[#allocation5 + $0x598] sm:$0xff]
    %v287 = vld [vmem:[#allocation5 + $0x5a0] sm:$0xff]
    %v288 = vld [vmem:[#allocation5 + $0x5a8] sm:$0xff]
    %v289 = vld [vmem:[#allocation5 + $0x5b0] sm:$0xff]
    %v290 = vld [vmem:[#allocation5 + $0x5b8] sm:$0xff]
    %v291 = vld [vmem:[#allocation5 + $0x5c0] sm:$0xff]
    %v292 = vld [vmem:[#allocation5 + $0x5c8] sm:$0xff]
    %v293 = vld [vmem:[#allocation5 + $0x5d0] sm:$0xff]
    %v294 = vld [vmem:[#allocation5 + $0x5d8] sm:$0xff]
    %v295 = vld [vmem:[#allocation5 + $0x5e0] sm:$0xff]
    %v296 = vld [vmem:[#allocation5 + $0x5e8] sm:$0xff]
    %v297 = vld [vmem:[#allocation5 + $0x5f0] sm:$0xff]
    %v298 = vld [vmem:[#allocation5 + $0x5f8] sm:$0xff]
    %v299 = vld [vmem:[#allocation5 + $0x600] sm:$0xff]
    %v300 = vld [vmem:[#allocation5 + $0x608] sm:$0xff]
    %v301 = vld [vmem:[#allocation5 + $0x610] sm:$0xff]
    %v302 = vld [vmem:[#allocation5 + $0x618] sm:$0xff]
    %v303 = vld [vmem:[#allocation5 + $0x620] sm:$0xff]
    %v304 = vld [vmem:[#allocation5 + $0x628] sm:$0xff]
    %v305 = vld [vmem:[#allocation5 + $0x630] sm:$0xff]
    %v306 = vld [vmem:[#allocation5 + $0x638] sm:$0xff]
    %v307 = vld [vmem:[#allocation5 + $0x640] sm:$0xff]
    %v308 = vld [vmem:[#allocation5 + $0x648] sm:$0xff]
    %v309 = vld [vmem:[#allocation5 + $0x650] sm:$0xff]
    %v310 = vld [vmem:[#allocation5 + $0x658] sm:$0xff]
    %v311 = vld [vmem:[#allocation5 + $0x660] sm:$0xff]
    %v312 = vld [vmem:[#allocation5 + $0x668] sm:$0xff]
    %v313 = vld [vmem:[#allocation5 + $0x670] sm:$0xff]
    %v314 = vld [vmem:[#allocation5 + $0x678] sm:$0xff]
    %v315 = vld [vmem:[#allocation5 + $0x680] sm:$0xff]
    %v316 = vld [vmem:[#allocation5 + $0x688] sm:$0xff]
    %v317 = vld [vmem:[#allocation5 + $0x690] sm:$0xff]
    %v318 = vld [vmem:[#allocation5 + $0x698] sm:$0xff]
    %v319 = vld [vmem:[#allocation5 + $0x6a0] sm:$0xff]
    %v320 = vld [vmem:[#allocation5 + $0x6a8] sm:$0xff]
    %v321 = vld [vmem:[#allocation5 + $0x6b0] sm:$0xff]
    %v322 = vld [vmem:[#allocation5 + $0x6b8] sm:$0xff]
    %v323 = vld [vmem:[#allocation5 + $0x6c0] sm:$0xff]
    %v324 = vld [vmem:[#allocation5 + $0x6c8] sm:$0xff]
    %v325 = vld [vmem:[#allocation5 + $0x6d0] sm:$0xff]
    %v326 = vld [vmem:[#allocation5 + $0x6d8] sm:$0xff]
    %v327 = vld [vmem:[#allocation5 + $0x6e0] sm:$0xff]
    %v328 = vld [vmem:[#allocation5 + $0x6e8] sm:$0xff]
    %v329 = vld [vmem:[#allocation5 + $0x6f0] sm:$0xff]
    %v330 = vld [vmem:[#allocation5 + $0x6f8] sm:$0xff]
    %v331 = vld [vmem:[#allocation5 + $0x700] sm:$0xff]
    %v332 = vld [vmem:[#allocation5 + $0x708] sm:$0xff]
    %v333 = vld [vmem:[#allocation5 + $0x710] sm:$0xff]
    %v334 = vld [vmem:[#allocation5 + $0x718] sm:$0xff]
    %v335 = vld [vmem:[#allocation5 + $0x720] sm:$0xff]
    %v336 = vld [vmem:[#allocation5 + $0x728] sm:$0xff]
    %v337 = vld [vmem:[#allocation5 + $0x730] sm:$0xff]
    %v338 = vld [vmem:[#allocation5 + $0x738] sm:$0xff]
    %v339 = vld [vmem:[#allocation5 + $0x740] sm:$0xff]
    %v340 = vld [vmem:[#allocation5 + $0x748] sm:$0xff]
    %v341 = vld [vmem:[#allocation5 + $0x750] sm:$0xff]
    %v342 = vld [vmem:[#allocation5 + $0x758] sm:$0xff]
    %v343 = vld [vmem:[#allocation5 + $0x760] sm:$0xff]
    %v344 = vld [vmem:[#allocation5 + $0x768] sm:$0xff]
    %v345 = vld [vmem:[#allocation5 + $0x770] sm:$0xff]
    %v346 = vld [vmem:[#allocation5 + $0x778] sm:$0xff]
    %v347 = vld [vmem:[#allocation5 + $0x780] sm:$0xff]
    %v348 = vld [vmem:[#allocation5 + $0x788] sm:$0xff]
    %v349 = vld [vmem:[#allocation5 + $0x790] sm:$0xff]
    %v350 = vld [vmem:[#allocation5 + $0x798] sm:$0xff]
    %v351 = vld [vmem:[#allocation5 + $0x7a0] sm:$0xff]
    %v352 = vld [vmem:[#allocation5 + $0x7a8] sm:$0xff]
    %v353 = vld [vmem:[#allocation5 + $0x7b0] sm:$0xff]
    %v354 = vld [vmem:[#allocation5 + $0x7b8] sm:$0xff]
    %v355 = vld [vmem:[#allocation5 + $0x7c0] sm:$0xff]
    %v356 = vld [vmem:[#allocation5 + $0x7c8] sm:$0xff]
    %v357 = vld [vmem:[#allocation5 + $0x7d0] sm:$0xff]
    %v358 = vld [vmem:[#allocation5 + $0x7d8] sm:$0xff]
    %v359 = vld [vmem:[#allocation5 + $0x7e0] sm:$0xff]
    %v360 = vld [vmem:[#allocation5 + $0x7e8] sm:$0xff]
    %v361 = vld [vmem:[#allocation5 + $0x7f0] sm:$0xff]
    %v362 = vld [vmem:[#allocation5 + $0x7f8] sm:$0xff]
    %v363 = vld [vmem:[#allocation5 + $0x800] sm:$0xff]
    %v364 = vld [vmem:[#allocation5 + $0x808] sm:$0xff]
    %v365 = vld [vmem:[#allocation5 + $0x810] sm:$0xff]
    %v366 = vld [vmem:[#allocation5 + $0x818] sm:$0xff]
    %v367 = vld [vmem:[#allocation5 + $0x820] sm:$0xff]
    %v368 = vld [vmem:[#allocation5 + $0x828] sm:$0xff]
    %v369 = vld [vmem:[#allocation5 + $0x830] sm:$0xff]
    %v370 = vld [vmem:[#allocation5 + $0x838] sm:$0xff]
    %v371 = vld [vmem:[#allocation5 + $0x840] sm:$0xff]
    %v372 = vld [vmem:[#allocation5 + $0x848] sm:$0xff]
    %v373 = vld [vmem:[#allocation5 + $0x850] sm:$0xff]
    %v374 = vld [vmem:[#allocation5 + $0x858] sm:$0xff]
    %v375 = vld [vmem:[#allocation5 + $0x860] sm:$0xff]
    %v376 = vld [vmem:[#allocation5 + $0x868] sm:$0xff]
    %v377 = vld [vmem:[#allocation5 + $0x870] sm:$0xff]
    %v378 = vld [vmem:[#allocation5 + $0x878] sm:$0xff]
    %v379 = vld [vmem:[#allocation5 + $0x880] sm:$0xff]
    %v380 = vld [vmem:[#allocation5 + $0x888] sm:$0xff]
    %v381 = vld [vmem:[#allocation5 + $0x890] sm:$0xff]
    %v382 = vld [vmem:[#allocation5 + $0x898] sm:$0xff]
    %v383 = vld [vmem:[#allocation5 + $0x8a0] sm:$0xff]
    %v384 = vld [vmem:[#allocation5 + $0x8a8] sm:$0xff]
    %v385 = vld [vmem:[#allocation5 + $0x8b0] sm:$0xff]
    %v386 = vld [vmem:[#allocation5 + $0x8b8] sm:$0xff]
    %v387 = vld [vmem:[#allocation5 + $0x8c0] sm:$0xff]
    %v388 = vld [vmem:[#allocation5 + $0x8c8] sm:$0xff]
    %v389 = vld [vmem:[#allocation5 + $0x8d0] sm:$0xff]
    %v390 = vld [vmem:[#allocation5 + $0x8d8] sm:$0xff]
    %v391 = vld [vmem:[#allocation5 + $0x8e0] sm:$0xff]
    %v392 = vld [vmem:[#allocation5 + $0x8e8] sm:$0xff]
    %v393 = vld [vmem:[#allocation5 + $0x8f0] sm:$0xff]
    %v394 = vld [vmem:[#allocation5 + $0x8f8] sm:$0xff]
    %v395 = vld [vmem:[#allocation5 + $0x900] sm:$0xff]
    %v396 = vld [vmem:[#allocation5 + $0x908] sm:$0xff]
    %v397 = vld [vmem:[#allocation5 + $0x910] sm:$0xff]
    %v398 = vld [vmem:[#allocation5 + $0x918] sm:$0xff]
    %v399 = vld [vmem:[#allocation5 + $0x920] sm:$0xff]
    %v400 = vld [vmem:[#allocation5 + $0x928] sm:$0xff]
    %v401 = vld [vmem:[#allocation5 + $0x930] sm:$0xff]
    %v402 = vld [vmem:[#allocation5 + $0x938] sm:$0xff]
    %v403 = vld [vmem:[#allocation5 + $0x940] sm:$0xff]
    %v404 = vld [vmem:[#allocation5 + $0x948] sm:$0xff]
    %v405 = vld [vmem:[#allocation5 + $0x950] sm:$0xff]
    %v406 = vld [vmem:[#allocation5 + $0x958] sm:$0xff]
    %v407 = vld [vmem:[#allocation5 + $0x960] sm:$0xff]
    %v408 = vld [vmem:[#allocation5 + $0x968] sm:$0xff]
    %v409 = vld [vmem:[#allocation5 + $0x970] sm:$0xff]
    %v410 = vld [vmem:[#allocation5 + $0x978] sm:$0xff]
    %v411 = vld [vmem:[#allocation5 + $0x980] sm:$0xff]
    %v412 = vld [vmem:[#allocation5 + $0x988] sm:$0xff]
    %v413 = vld [vmem:[#allocation5 + $0x990] sm:$0xff]
    %v414 = vld [vmem:[#allocation5 + $0x998] sm:$0xff]
    %v415 = vld [vmem:[#allocation5 + $0x9a0] sm:$0xff]
    %v416 = vld [vmem:[#allocation5 + $0x9a8] sm:$0xff]
    %v417 = vld [vmem:[#allocation5 + $0x9b0] sm:$0xff]
    %v418 = vld [vmem:[#allocation5 + $0x9b8] sm:$0xff]
    %v419 = vld [vmem:[#allocation5 + $0x9c0] sm:$0xff]
    %v420 = vld [vmem:[#allocation5 + $0x9c8] sm:$0xff]
    %v421 = vld [vmem:[#allocation5 + $0x9d0] sm:$0xff]
    %v422 = vld [vmem:[#allocation5 + $0x9d8] sm:$0xff]
    %v423 = vld [vmem:[#allocation5 + $0x9e0] sm:$0xff]
    %v424 = vld [vmem:[#allocation5 + $0x9e8] sm:$0xff]
    %v425 = vld [vmem:[#allocation5 + $0x9f0] sm:$0xff]
    %v426 = vld [vmem:[#allocation5 + $0x9f8] sm:$0xff]
    %v427 = vld [vmem:[#allocation7] sm:$0xf]
    %v429 = vlaneseq
    %v430 = vshrl.u32 %v429, 7
    %v431 = vsub.s32 0, %v430
    %v432 = vrot.slane %v427, %v431
    %v433 = vlaneseq
    %v434 = vshrl.u32 %v433, 7
    %v435 = vsub.s32 1, %v434
    %v436 = vrot.slane %v427, %v435
    %v437 = vlaneseq
    %v438 = vshrl.u32 %v437, 7
    %v439 = vsub.s32 2, %v438
    %v440 = vrot.slane %v427, %v439
    %v441 = vlaneseq
    %v442 = vshrl.u32 %v441, 7
    %v443 = vsub.s32 3, %v442
    %v444 = vrot.slane %v427, %v443
    %v769 = vunpack.c.l.b16 %v107
    %v770 = vunpack.c.h.b16 %v107
    %v771 = vunpack.c.l.b16 %v108
    %v772 = vunpack.c.h.b16 %v108
    %v773 = vunpack.c.l.b16 %v109
    %v774 = vunpack.c.h.b16 %v109
    %v775 = vunpack.c.l.b16 %v110
    %v776 = vunpack.c.h.b16 %v110
    %v777 = vunpack.c.l.b16 %v111
    %v778 = vunpack.c.h.b16 %v111
    %v779 = vunpack.c.l.b16 %v112
    %v780 = vunpack.c.h.b16 %v112
    %v781 = vunpack.c.l.b16 %v113
    %v782 = vunpack.c.h.b16 %v113
    %v783 = vunpack.c.l.b16 %v114
    %v784 = vunpack.c.h.b16 %v114
    %v785 = vunpack.c.l.b16 %v115
    %v786 = vunpack.c.h.b16 %v115
    %v787 = vunpack.c.l.b16 %v116
    %v788 = vunpack.c.h.b16 %v116
    %v789 = vunpack.c.l.b16 %v117
    %v790 = vunpack.c.h.b16 %v117
    %v791 = vunpack.c.l.b16 %v118
    %v792 = vunpack.c.h.b16 %v118
    %v793 = vunpack.c.l.b16 %v119
    %v794 = vunpack.c.h.b16 %v119
    %v795 = vunpack.c.l.b16 %v120
    %v796 = vunpack.c.h.b16 %v120
    %v797 = vunpack.c.l.b16 %v121
    %v798 = vunpack.c.h.b16 %v121
    %v799 = vunpack.c.l.b16 %v122
    %v800 = vunpack.c.h.b16 %v122
    %v801 = vunpack.c.l.b16 %v123
    %v802 = vunpack.c.h.b16 %v123
    %v803 = vunpack.c.l.b16 %v124
    %v804 = vunpack.c.h.b16 %v124
    %v805 = vunpack.c.l.b16 %v125
    %v806 = vunpack.c.h.b16 %v125
    %v807 = vunpack.c.l.b16 %v126
    %v808 = vunpack.c.h.b16 %v126
    %v809 = vunpack.c.l.b16 %v127
    %v810 = vunpack.c.h.b16 %v127
    %v811 = vunpack.c.l.b16 %v128
    %v812 = vunpack.c.h.b16 %v128
    %v813 = vunpack.c.l.b16 %v129
    %v814 = vunpack.c.h.b16 %v129
    %v815 = vunpack.c.l.b16 %v130
    %v816 = vunpack.c.h.b16 %v130
    %v817 = vunpack.c.l.b16 %v131
    %v818 = vunpack.c.h.b16 %v131
    %v819 = vunpack.c.l.b16 %v132
    %v820 = vunpack.c.h.b16 %v132
    %v821 = vunpack.c.l.b16 %v133
    %v822 = vunpack.c.h.b16 %v133
    %v823 = vunpack.c.l.b16 %v134
    %v824 = vunpack.c.h.b16 %v134
    %v825 = vunpack.c.l.b16 %v135
    %v826 = vunpack.c.h.b16 %v135
    %v827 = vunpack.c.l.b16 %v136
    %v828 = vunpack.c.h.b16 %v136
    %v829 = vunpack.c.l.b16 %v137
    %v830 = vunpack.c.h.b16 %v137
    %v831 = vunpack.c.l.b16 %v138
    %v832 = vunpack.c.h.b16 %v138
    %v833 = vunpack.c.l.b16 %v139
    %v834 = vunpack.c.h.b16 %v139
    %v835 = vunpack.c.l.b16 %v140
    %v836 = vunpack.c.h.b16 %v140
    %v837 = vunpack.c.l.b16 %v141
    %v838 = vunpack.c.h.b16 %v141
    %v839 = vunpack.c.l.b16 %v142
    %v840 = vunpack.c.h.b16 %v142
    %v841 = vunpack.c.l.b16 %v143
    %v842 = vunpack.c.h.b16 %v143
    %v843 = vunpack.c.l.b16 %v144
    %v844 = vunpack.c.h.b16 %v144
    %v845 = vunpack.c.l.b16 %v145
    %v846 = vunpack.c.h.b16 %v145
    %v847 = vunpack.c.l.b16 %v146
    %v848 = vunpack.c.h.b16 %v146
    %v849 = vunpack.c.l.b16 %v147
    %v850 = vunpack.c.h.b16 %v147
    %v851 = vunpack.c.l.b16 %v148
    %v852 = vunpack.c.h.b16 %v148
    %v853 = vunpack.c.l.b16 %v149
    %v854 = vunpack.c.h.b16 %v149
    %v855 = vunpack.c.l.b16 %v150
    %v856 = vunpack.c.h.b16 %v150
    %v857 = vunpack.c.l.b16 %v151
    %v858 = vunpack.c.h.b16 %v151
    %v859 = vunpack.c.l.b16 %v152
    %v860 = vunpack.c.h.b16 %v152
    %v861 = vunpack.c.l.b16 %v153
    %v862 = vunpack.c.h.b16 %v153
    %v863 = vunpack.c.l.b16 %v154
    %v864 = vunpack.c.h.b16 %v154
    %v865 = vunpack.c.l.b16 %v155
    %v866 = vunpack.c.h.b16 %v155
    %v867 = vunpack.c.l.b16 %v156
    %v868 = vunpack.c.h.b16 %v156
    %v869 = vunpack.c.l.b16 %v157
    %v870 = vunpack.c.h.b16 %v157
    %v871 = vunpack.c.l.b16 %v158
    %v872 = vunpack.c.h.b16 %v158
    %v873 = vunpack.c.l.b16 %v159
    %v874 = vunpack.c.h.b16 %v159
    %v875 = vunpack.c.l.b16 %v160
    %v876 = vunpack.c.h.b16 %v160
    %v877 = vunpack.c.l.b16 %v161
    %v878 = vunpack.c.h.b16 %v161
    %v879 = vunpack.c.l.b16 %v162
    %v880 = vunpack.c.h.b16 %v162
    %v881 = vunpack.c.l.b16 %v163
    %v882 = vunpack.c.h.b16 %v163
    %v883 = vunpack.c.l.b16 %v164
    %v884 = vunpack.c.h.b16 %v164
    %v885 = vunpack.c.l.b16 %v165
    %v886 = vunpack.c.h.b16 %v165
    %v887 = vunpack.c.l.b16 %v166
    %v888 = vunpack.c.h.b16 %v166
    %v889 = vunpack.c.l.b16 %v167
    %v890 = vunpack.c.h.b16 %v167
    %v891 = vunpack.c.l.b16 %v168
    %v892 = vunpack.c.h.b16 %v168
    %v893 = vunpack.c.l.b16 %v169
    %v894 = vunpack.c.h.b16 %v169
    %v895 = vunpack.c.l.b16 %v170
    %v896 = vunpack.c.h.b16 %v170
    %v897 = vunpack.c.l.b16 %v171
    %v898 = vunpack.c.h.b16 %v171
    %v899 = vunpack.c.l.b16 %v172
    %v900 = vunpack.c.h.b16 %v172
    %v901 = vunpack.c.l.b16 %v173
    %v902 = vunpack.c.h.b16 %v173
    %v903 = vunpack.c.l.b16 %v174
    %v904 = vunpack.c.h.b16 %v174
    %v905 = vunpack.c.l.b16 %v175
    %v906 = vunpack.c.h.b16 %v175
    %v907 = vunpack.c.l.b16 %v176
    %v908 = vunpack.c.h.b16 %v176
    %v909 = vunpack.c.l.b16 %v177
    %v910 = vunpack.c.h.b16 %v177
    %v911 = vunpack.c.l.b16 %v178
    %v912 = vunpack.c.h.b16 %v178
    %v913 = vunpack.c.l.b16 %v179
    %v914 = vunpack.c.h.b16 %v179
    %v915 = vunpack.c.l.b16 %v180
    %v916 = vunpack.c.h.b16 %v180
    %v917 = vunpack.c.l.b16 %v181
    %v918 = vunpack.c.h.b16 %v181
    %v919 = vunpack.c.l.b16 %v182
    %v920 = vunpack.c.h.b16 %v182
    %v921 = vunpack.c.l.b16 %v183
    %v922 = vunpack.c.h.b16 %v183
    %v923 = vunpack.c.l.b16 %v184
    %v924 = vunpack.c.h.b16 %v184
    %v925 = vunpack.c.l.b16 %v185
    %v926 = vunpack.c.h.b16 %v185
    %v927 = vunpack.c.l.b16 %v186
    %v928 = vunpack.c.h.b16 %v186
    %v929 = vunpack.c.l.b16 %v187
    %v930 = vunpack.c.h.b16 %v187
    %v931 = vunpack.c.l.b16 %v188
    %v932 = vunpack.c.h.b16 %v188
    %v933 = vunpack.c.l.b16 %v189
    %v934 = vunpack.c.h.b16 %v189
    %v935 = vunpack.c.l.b16 %v190
    %v936 = vunpack.c.h.b16 %v190
    %v937 = vunpack.c.l.b16 %v191
    %v938 = vunpack.c.h.b16 %v191
    %v939 = vunpack.c.l.b16 %v192
    %v940 = vunpack.c.h.b16 %v192
    %v941 = vunpack.c.l.b16 %v193
    %v942 = vunpack.c.h.b16 %v193
    %v943 = vunpack.c.l.b16 %v194
    %v944 = vunpack.c.h.b16 %v194
    %v945 = vunpack.c.l.b16 %v195
    %v946 = vunpack.c.h.b16 %v195
    %v947 = vunpack.c.l.b16 %v196
    %v948 = vunpack.c.h.b16 %v196
    %v949 = vunpack.c.l.b16 %v197
    %v950 = vunpack.c.h.b16 %v197
    %v951 = vunpack.c.l.b16 %v198
    %v952 = vunpack.c.h.b16 %v198
    %v953 = vunpack.c.l.b16 %v199
    %v954 = vunpack.c.h.b16 %v199
    %v955 = vunpack.c.l.b16 %v200
    %v956 = vunpack.c.h.b16 %v200
    %v957 = vunpack.c.l.b16 %v201
    %v958 = vunpack.c.h.b16 %v201
    %v959 = vunpack.c.l.b16 %v202
    %v960 = vunpack.c.h.b16 %v202
    %v961 = vunpack.c.l.b16 %v203
    %v962 = vunpack.c.h.b16 %v203
    %v963 = vunpack.c.l.b16 %v204
    %v964 = vunpack.c.h.b16 %v204
    %v965 = vunpack.c.l.b16 %v205
    %v966 = vunpack.c.h.b16 %v205
    %v967 = vunpack.c.l.b16 %v206
    %v968 = vunpack.c.h.b16 %v206
    %v969 = vunpack.c.l.b16 %v207
    %v970 = vunpack.c.h.b16 %v207
    %v971 = vunpack.c.l.b16 %v208
    %v972 = vunpack.c.h.b16 %v208
    %v973 = vunpack.c.l.b16 %v209
    %v974 = vunpack.c.h.b16 %v209
    %v975 = vunpack.c.l.b16 %v210
    %v976 = vunpack.c.h.b16 %v210
    %v977 = vunpack.c.l.b16 %v211
    %v978 = vunpack.c.h.b16 %v211
    %v979 = vunpack.c.l.b16 %v212
    %v980 = vunpack.c.h.b16 %v212
    %v981 = vunpack.c.l.b16 %v213
    %v982 = vunpack.c.h.b16 %v213
    %v983 = vunpack.c.l.b16 %v214
    %v984 = vunpack.c.h.b16 %v214
    %v985 = vunpack.c.l.b16 %v215
    %v986 = vunpack.c.h.b16 %v215
    %v987 = vunpack.c.l.b16 %v216
    %v988 = vunpack.c.h.b16 %v216
    %v989 = vunpack.c.l.b16 %v217
    %v990 = vunpack.c.h.b16 %v217
    %v991 = vunpack.c.l.b16 %v218
    %v992 = vunpack.c.h.b16 %v218
    %v993 = vunpack.c.l.b16 %v219
    %v994 = vunpack.c.h.b16 %v219
    %v995 = vunpack.c.l.b16 %v220
    %v996 = vunpack.c.h.b16 %v220
    %v997 = vunpack.c.l.b16 %v221
    %v998 = vunpack.c.h.b16 %v221
    %v999 = vunpack.c.l.b16 %v222
    %v1000 = vunpack.c.h.b16 %v222
    %v1001 = vunpack.c.l.b16 %v223
    %v1002 = vunpack.c.h.b16 %v223
    %v1003 = vunpack.c.l.b16 %v224
    %v1004 = vunpack.c.h.b16 %v224
    %v1005 = vunpack.c.l.b16 %v225
    %v1006 = vunpack.c.h.b16 %v225
    %v1007 = vunpack.c.l.b16 %v226
    %v1008 = vunpack.c.h.b16 %v226
    %v1009 = vunpack.c.l.b16 %v227
    %v1010 = vunpack.c.h.b16 %v227
    %v1011 = vunpack.c.l.b16 %v228
    %v1012 = vunpack.c.h.b16 %v228
    %v1013 = vunpack.c.l.b16 %v229
    %v1014 = vunpack.c.h.b16 %v229
    %v1015 = vunpack.c.l.b16 %v230
    %v1016 = vunpack.c.h.b16 %v230
    %v1017 = vunpack.c.l.b16 %v231
    %v1018 = vunpack.c.h.b16 %v231
    %v1019 = vunpack.c.l.b16 %v232
    %v1020 = vunpack.c.h.b16 %v232
    %v1021 = vunpack.c.l.b16 %v233
    %v1022 = vunpack.c.h.b16 %v233
    %v1023 = vunpack.c.l.b16 %v234
    %v1024 = vunpack.c.h.b16 %v234
    %v1025 = vunpack.c.l.b16 %v235
    %v1026 = vunpack.c.h.b16 %v235
    %v1027 = vunpack.c.l.b16 %v236
    %v1028 = vunpack.c.h.b16 %v236
    %v1029 = vunpack.c.l.b16 %v237
    %v1030 = vunpack.c.h.b16 %v237
    %v1031 = vunpack.c.l.b16 %v238
    %v1032 = vunpack.c.h.b16 %v238
    %v1033 = vunpack.c.l.b16 %v239
    %v1034 = vunpack.c.h.b16 %v239
    %v1035 = vunpack.c.l.b16 %v240
    %v1036 = vunpack.c.h.b16 %v240
    %v1037 = vunpack.c.l.b16 %v241
    %v1038 = vunpack.c.h.b16 %v241
    %v1039 = vunpack.c.l.b16 %v242
    %v1040 = vunpack.c.h.b16 %v242
    %v1041 = vunpack.c.l.b16 %v243
    %v1042 = vunpack.c.h.b16 %v243
    %v1043 = vunpack.c.l.b16 %v244
    %v1044 = vunpack.c.h.b16 %v244
    %v1045 = vunpack.c.l.b16 %v245
    %v1046 = vunpack.c.h.b16 %v245
    %v1047 = vunpack.c.l.b16 %v246
    %v1048 = vunpack.c.h.b16 %v246
    %v1049 = vunpack.c.l.b16 %v247
    %v1050 = vunpack.c.h.b16 %v247
    %v1051 = vunpack.c.l.b16 %v248
    %v1052 = vunpack.c.h.b16 %v248
    %v1053 = vunpack.c.l.b16 %v249
    %v1054 = vunpack.c.h.b16 %v249
    %v1055 = vunpack.c.l.b16 %v250
    %v1056 = vunpack.c.h.b16 %v250
    %v1057 = vunpack.c.l.b16 %v251
    %v1058 = vunpack.c.h.b16 %v251
    %v1059 = vunpack.c.l.b16 %v252
    %v1060 = vunpack.c.h.b16 %v252
    %v1061 = vunpack.c.l.b16 %v253
    %v1062 = vunpack.c.h.b16 %v253
    %v1063 = vunpack.c.l.b16 %v254
    %v1064 = vunpack.c.h.b16 %v254
    %v1065 = vunpack.c.l.b16 %v255
    %v1066 = vunpack.c.h.b16 %v255
    %v1067 = vunpack.c.l.b16 %v256
    %v1068 = vunpack.c.h.b16 %v256
    %v1069 = vunpack.c.l.b16 %v257
    %v1070 = vunpack.c.h.b16 %v257
    %v1071 = vunpack.c.l.b16 %v258
    %v1072 = vunpack.c.h.b16 %v258
    %v1073 = vunpack.c.l.b16 %v259
    %v1074 = vunpack.c.h.b16 %v259
    %v1075 = vunpack.c.l.b16 %v260
    %v1076 = vunpack.c.h.b16 %v260
    %v1077 = vunpack.c.l.b16 %v261
    %v1078 = vunpack.c.h.b16 %v261
    %v1079 = vunpack.c.l.b16 %v262
    %v1080 = vunpack.c.h.b16 %v262
    %v1081 = vunpack.c.l.b16 %v263
    %v1082 = vunpack.c.h.b16 %v263
    %v1083 = vunpack.c.l.b16 %v264
    %v1084 = vunpack.c.h.b16 %v264
    %v1085 = vunpack.c.l.b16 %v265
    %v1086 = vunpack.c.h.b16 %v265
    %v1087 = vunpack.c.l.b16 %v266
    %v1088 = vunpack.c.h.b16 %v266
    %v1089 = vunpack.c.l.b16 %v267
    %v1090 = vunpack.c.h.b16 %v267
    %v1091 = vunpack.c.l.b16 %v268
    %v1092 = vunpack.c.h.b16 %v268
    %v1093 = vunpack.c.l.b16 %v269
    %v1094 = vunpack.c.h.b16 %v269
    %v1095 = vunpack.c.l.b16 %v270
    %v1096 = vunpack.c.h.b16 %v270
    %v1097 = vunpack.c.l.b16 %v271
    %v1098 = vunpack.c.h.b16 %v271
    %v1099 = vunpack.c.l.b16 %v272
    %v1100 = vunpack.c.h.b16 %v272
    %v1101 = vunpack.c.l.b16 %v273
    %v1102 = vunpack.c.h.b16 %v273
    %v1103 = vunpack.c.l.b16 %v274
    %v1104 = vunpack.c.h.b16 %v274
    %v1105 = vunpack.c.l.b16 %v275
    %v1106 = vunpack.c.h.b16 %v275
    %v1107 = vunpack.c.l.b16 %v276
    %v1108 = vunpack.c.h.b16 %v276
    %v1109 = vunpack.c.l.b16 %v277
    %v1110 = vunpack.c.h.b16 %v277
    %v1111 = vunpack.c.l.b16 %v278
    %v1112 = vunpack.c.h.b16 %v278
    %v1113 = vunpack.c.l.b16 %v279
    %v1114 = vunpack.c.h.b16 %v279
    %v1115 = vunpack.c.l.b16 %v280
    %v1116 = vunpack.c.h.b16 %v280
    %v1117 = vunpack.c.l.b16 %v281
    %v1118 = vunpack.c.h.b16 %v281
    %v1119 = vunpack.c.l.b16 %v282
    %v1120 = vunpack.c.h.b16 %v282
    %v1121 = vunpack.c.l.b16 %v283
    %v1122 = vunpack.c.h.b16 %v283
    %v1123 = vunpack.c.l.b16 %v284
    %v1124 = vunpack.c.h.b16 %v284
    %v1125 = vunpack.c.l.b16 %v285
    %v1126 = vunpack.c.h.b16 %v285
    %v1127 = vunpack.c.l.b16 %v286
    %v1128 = vunpack.c.h.b16 %v286
    %v1129 = vunpack.c.l.b16 %v287
    %v1130 = vunpack.c.h.b16 %v287
    %v1131 = vunpack.c.l.b16 %v288
    %v1132 = vunpack.c.h.b16 %v288
    %v1133 = vunpack.c.l.b16 %v289
    %v1134 = vunpack.c.h.b16 %v289
    %v1135 = vunpack.c.l.b16 %v290
    %v1136 = vunpack.c.h.b16 %v290
    %v1137 = vunpack.c.l.b16 %v291
    %v1138 = vunpack.c.h.b16 %v291
    %v1139 = vunpack.c.l.b16 %v292
    %v1140 = vunpack.c.h.b16 %v292
    %v1141 = vunpack.c.l.b16 %v293
    %v1142 = vunpack.c.h.b16 %v293
    %v1143 = vunpack.c.l.b16 %v294
    %v1144 = vunpack.c.h.b16 %v294
    %v1145 = vunpack.c.l.b16 %v295
    %v1146 = vunpack.c.h.b16 %v295
    %v1147 = vunpack.c.l.b16 %v296
    %v1148 = vunpack.c.h.b16 %v296
    %v1149 = vunpack.c.l.b16 %v297
    %v1150 = vunpack.c.h.b16 %v297
    %v1151 = vunpack.c.l.b16 %v298
    %v1152 = vunpack.c.h.b16 %v298
    %v1153 = vunpack.c.l.b16 %v299
    %v1154 = vunpack.c.h.b16 %v299
    %v1155 = vunpack.c.l.b16 %v300
    %v1156 = vunpack.c.h.b16 %v300
    %v1157 = vunpack.c.l.b16 %v301
    %v1158 = vunpack.c.h.b16 %v301
    %v1159 = vunpack.c.l.b16 %v302
    %v1160 = vunpack.c.h.b16 %v302
    %v1161 = vunpack.c.l.b16 %v303
    %v1162 = vunpack.c.h.b16 %v303
    %v1163 = vunpack.c.l.b16 %v304
    %v1164 = vunpack.c.h.b16 %v304
    %v1165 = vunpack.c.l.b16 %v305
    %v1166 = vunpack.c.h.b16 %v305
    %v1167 = vunpack.c.l.b16 %v306
    %v1168 = vunpack.c.h.b16 %v306
    %v1169 = vunpack.c.l.b16 %v307
    %v1170 = vunpack.c.h.b16 %v307
    %v1171 = vunpack.c.l.b16 %v308
    %v1172 = vunpack.c.h.b16 %v308
    %v1173 = vunpack.c.l.b16 %v309
    %v1174 = vunpack.c.h.b16 %v309
    %v1175 = vunpack.c.l.b16 %v310
    %v1176 = vunpack.c.h.b16 %v310
    %v1177 = vunpack.c.l.b16 %v311
    %v1178 = vunpack.c.h.b16 %v311
    %v1179 = vunpack.c.l.b16 %v312
    %v1180 = vunpack.c.h.b16 %v312
    %v1181 = vunpack.c.l.b16 %v313
    %v1182 = vunpack.c.h.b16 %v313
    %v1183 = vunpack.c.l.b16 %v314
    %v1184 = vunpack.c.h.b16 %v314
    %v1185 = vunpack.c.l.b16 %v315
    %v1186 = vunpack.c.h.b16 %v315
    %v1187 = vunpack.c.l.b16 %v316
    %v1188 = vunpack.c.h.b16 %v316
    %v1189 = vunpack.c.l.b16 %v317
    %v1190 = vunpack.c.h.b16 %v317
    %v1191 = vunpack.c.l.b16 %v318
    %v1192 = vunpack.c.h.b16 %v318
    %v1193 = vunpack.c.l.b16 %v319
    %v1194 = vunpack.c.h.b16 %v319
    %v1195 = vunpack.c.l.b16 %v320
    %v1196 = vunpack.c.h.b16 %v320
    %v1197 = vunpack.c.l.b16 %v321
    %v1198 = vunpack.c.h.b16 %v321
    %v1199 = vunpack.c.l.b16 %v322
    %v1200 = vunpack.c.h.b16 %v322
    %v1201 = vunpack.c.l.b16 %v323
    %v1202 = vunpack.c.h.b16 %v323
    %v1203 = vunpack.c.l.b16 %v324
    %v1204 = vunpack.c.h.b16 %v324
    %v1205 = vunpack.c.l.b16 %v325
    %v1206 = vunpack.c.h.b16 %v325
    %v1207 = vunpack.c.l.b16 %v326
    %v1208 = vunpack.c.h.b16 %v326
    %v1209 = vunpack.c.l.b16 %v327
    %v1210 = vunpack.c.h.b16 %v327
    %v1211 = vunpack.c.l.b16 %v328
    %v1212 = vunpack.c.h.b16 %v328
    %v1213 = vunpack.c.l.b16 %v329
    %v1214 = vunpack.c.h.b16 %v329
    %v1215 = vunpack.c.l.b16 %v330
    %v1216 = vunpack.c.h.b16 %v330
    %v1217 = vunpack.c.l.b16 %v331
    %v1218 = vunpack.c.h.b16 %v331
    %v1219 = vunpack.c.l.b16 %v332
    %v1220 = vunpack.c.h.b16 %v332
    %v1221 = vunpack.c.l.b16 %v333
    %v1222 = vunpack.c.h.b16 %v333
    %v1223 = vunpack.c.l.b16 %v334
    %v1224 = vunpack.c.h.b16 %v334
    %v1225 = vunpack.c.l.b16 %v335
    %v1226 = vunpack.c.h.b16 %v335
    %v1227 = vunpack.c.l.b16 %v336
    %v1228 = vunpack.c.h.b16 %v336
    %v1229 = vunpack.c.l.b16 %v337
    %v1230 = vunpack.c.h.b16 %v337
    %v1231 = vunpack.c.l.b16 %v338
    %v1232 = vunpack.c.h.b16 %v338
    %v1233 = vunpack.c.l.b16 %v339
    %v1234 = vunpack.c.h.b16 %v339
    %v1235 = vunpack.c.l.b16 %v340
    %v1236 = vunpack.c.h.b16 %v340
    %v1237 = vunpack.c.l.b16 %v341
    %v1238 = vunpack.c.h.b16 %v341
    %v1239 = vunpack.c.l.b16 %v342
    %v1240 = vunpack.c.h.b16 %v342
    %v1241 = vunpack.c.l.b16 %v343
    %v1242 = vunpack.c.h.b16 %v343
    %v1243 = vunpack.c.l.b16 %v344
    %v1244 = vunpack.c.h.b16 %v344
    %v1245 = vunpack.c.l.b16 %v345
    %v1246 = vunpack.c.h.b16 %v345
    %v1247 = vunpack.c.l.b16 %v346
    %v1248 = vunpack.c.h.b16 %v346
    %v1249 = vunpack.c.l.b16 %v347
    %v1250 = vunpack.c.h.b16 %v347
    %v1251 = vunpack.c.l.b16 %v348
    %v1252 = vunpack.c.h.b16 %v348
    %v1253 = vunpack.c.l.b16 %v349
    %v1254 = vunpack.c.h.b16 %v349
    %v1255 = vunpack.c.l.b16 %v350
    %v1256 = vunpack.c.h.b16 %v350
    %v1257 = vunpack.c.l.b16 %v351
    %v1258 = vunpack.c.h.b16 %v351
    %v1259 = vunpack.c.l.b16 %v352
    %v1260 = vunpack.c.h.b16 %v352
    %v1261 = vunpack.c.l.b16 %v353
    %v1262 = vunpack.c.h.b16 %v353
    %v1263 = vunpack.c.l.b16 %v354
    %v1264 = vunpack.c.h.b16 %v354
    %v1265 = vunpack.c.l.b16 %v355
    %v1266 = vunpack.c.h.b16 %v355
    %v1267 = vunpack.c.l.b16 %v356
    %v1268 = vunpack.c.h.b16 %v356
    %v1269 = vunpack.c.l.b16 %v357
    %v1270 = vunpack.c.h.b16 %v357
    %v1271 = vunpack.c.l.b16 %v358
    %v1272 = vunpack.c.h.b16 %v358
    %v1273 = vunpack.c.l.b16 %v359
    %v1274 = vunpack.c.h.b16 %v359
    %v1275 = vunpack.c.l.b16 %v360
    %v1276 = vunpack.c.h.b16 %v360
    %v1277 = vunpack.c.l.b16 %v361
    %v1278 = vunpack.c.h.b16 %v361
    %v1279 = vunpack.c.l.b16 %v362
    %v1280 = vunpack.c.h.b16 %v362
    %v1281 = vunpack.c.l.b16 %v363
    %v1282 = vunpack.c.h.b16 %v363
    %v1283 = vunpack.c.l.b16 %v364
    %v1284 = vunpack.c.h.b16 %v364
    %v1285 = vunpack.c.l.b16 %v365
    %v1286 = vunpack.c.h.b16 %v365
    %v1287 = vunpack.c.l.b16 %v366
    %v1288 = vunpack.c.h.b16 %v366
    %v1289 = vunpack.c.l.b16 %v367
    %v1290 = vunpack.c.h.b16 %v367
    %v1291 = vunpack.c.l.b16 %v368
    %v1292 = vunpack.c.h.b16 %v368
    %v1293 = vunpack.c.l.b16 %v369
    %v1294 = vunpack.c.h.b16 %v369
    %v1295 = vunpack.c.l.b16 %v370
    %v1296 = vunpack.c.h.b16 %v370
    %v1297 = vunpack.c.l.b16 %v371
    %v1298 = vunpack.c.h.b16 %v371
    %v1299 = vunpack.c.l.b16 %v372
    %v1300 = vunpack.c.h.b16 %v372
    %v1301 = vunpack.c.l.b16 %v373
    %v1302 = vunpack.c.h.b16 %v373
    %v1303 = vunpack.c.l.b16 %v374
    %v1304 = vunpack.c.h.b16 %v374
    %v1305 = vunpack.c.l.b16 %v375
    %v1306 = vunpack.c.h.b16 %v375
    %v1307 = vunpack.c.l.b16 %v376
    %v1308 = vunpack.c.h.b16 %v376
    %v1309 = vunpack.c.l.b16 %v377
    %v1310 = vunpack.c.h.b16 %v377
    %v1311 = vunpack.c.l.b16 %v378
    %v1312 = vunpack.c.h.b16 %v378
    %v1313 = vunpack.c.l.b16 %v379
    %v1314 = vunpack.c.h.b16 %v379
    %v1315 = vunpack.c.l.b16 %v380
    %v1316 = vunpack.c.h.b16 %v380
    %v1317 = vunpack.c.l.b16 %v381
    %v1318 = vunpack.c.h.b16 %v381
    %v1319 = vunpack.c.l.b16 %v382
    %v1320 = vunpack.c.h.b16 %v382
    %v1321 = vunpack.c.l.b16 %v383
    %v1322 = vunpack.c.h.b16 %v383
    %v1323 = vunpack.c.l.b16 %v384
    %v1324 = vunpack.c.h.b16 %v384
    %v1325 = vunpack.c.l.b16 %v385
    %v1326 = vunpack.c.h.b16 %v385
    %v1327 = vunpack.c.l.b16 %v386
    %v1328 = vunpack.c.h.b16 %v386
    %v1329 = vunpack.c.l.b16 %v387
    %v1330 = vunpack.c.h.b16 %v387
    %v1331 = vunpack.c.l.b16 %v388
    %v1332 = vunpack.c.h.b16 %v388
    %v1333 = vunpack.c.l.b16 %v389
    %v1334 = vunpack.c.h.b16 %v389
    %v1335 = vunpack.c.l.b16 %v390
    %v1336 = vunpack.c.h.b16 %v390
    %v1337 = vunpack.c.l.b16 %v391
    %v1338 = vunpack.c.h.b16 %v391
    %v1339 = vunpack.c.l.b16 %v392
    %v1340 = vunpack.c.h.b16 %v392
    %v1341 = vunpack.c.l.b16 %v393
    %v1342 = vunpack.c.h.b16 %v393
    %v1343 = vunpack.c.l.b16 %v394
    %v1344 = vunpack.c.h.b16 %v394
    %v1345 = vunpack.c.l.b16 %v395
    %v1346 = vunpack.c.h.b16 %v395
    %v1347 = vunpack.c.l.b16 %v396
    %v1348 = vunpack.c.h.b16 %v396
    %v1349 = vunpack.c.l.b16 %v397
    %v1350 = vunpack.c.h.b16 %v397
    %v1351 = vunpack.c.l.b16 %v398
    %v1352 = vunpack.c.h.b16 %v398
    %v1353 = vunpack.c.l.b16 %v399
    %v1354 = vunpack.c.h.b16 %v399
    %v1355 = vunpack.c.l.b16 %v400
    %v1356 = vunpack.c.h.b16 %v400
    %v1357 = vunpack.c.l.b16 %v401
    %v1358 = vunpack.c.h.b16 %v401
    %v1359 = vunpack.c.l.b16 %v402
    %v1360 = vunpack.c.h.b16 %v402
    %v1361 = vunpack.c.l.b16 %v403
    %v1362 = vunpack.c.h.b16 %v403
    %v1363 = vunpack.c.l.b16 %v404
    %v1364 = vunpack.c.h.b16 %v404
    %v1365 = vunpack.c.l.b16 %v405
    %v1366 = vunpack.c.h.b16 %v405
    %v1367 = vunpack.c.l.b16 %v406
    %v1368 = vunpack.c.h.b16 %v406
    %v1369 = vunpack.c.l.b16 %v407
    %v1370 = vunpack.c.h.b16 %v407
    %v1371 = vunpack.c.l.b16 %v408
    %v1372 = vunpack.c.h.b16 %v408
    %v1373 = vunpack.c.l.b16 %v409
    %v1374 = vunpack.c.h.b16 %v409
    %v1375 = vunpack.c.l.b16 %v410
    %v1376 = vunpack.c.h.b16 %v410
    %v1377 = vunpack.c.l.b16 %v411
    %v1378 = vunpack.c.h.b16 %v411
    %v1379 = vunpack.c.l.b16 %v412
    %v1380 = vunpack.c.h.b16 %v412
    %v1381 = vunpack.c.l.b16 %v413
    %v1382 = vunpack.c.h.b16 %v413
    %v1383 = vunpack.c.l.b16 %v414
    %v1384 = vunpack.c.h.b16 %v414
    %v1385 = vunpack.c.l.b16 %v415
    %v1386 = vunpack.c.h.b16 %v415
    %v1387 = vunpack.c.l.b16 %v416
    %v1388 = vunpack.c.h.b16 %v416
    %v1389 = vunpack.c.l.b16 %v417
    %v1390 = vunpack.c.h.b16 %v417
    %v1391 = vunpack.c.l.b16 %v418
    %v1392 = vunpack.c.h.b16 %v418
    %v1393 = vunpack.c.l.b16 %v419
    %v1394 = vunpack.c.h.b16 %v419
    %v1395 = vunpack.c.l.b16 %v420
    %v1396 = vunpack.c.h.b16 %v420
    %v1397 = vunpack.c.l.b16 %v421
    %v1398 = vunpack.c.h.b16 %v421
    %v1399 = vunpack.c.l.b16 %v422
    %v1400 = vunpack.c.h.b16 %v422
    %v1401 = vunpack.c.l.b16 %v423
    %v1402 = vunpack.c.h.b16 %v423
    %v1403 = vunpack.c.l.b16 %v424
    %v1404 = vunpack.c.h.b16 %v424
    %v1405 = vunpack.c.l.b16 %v425
    %v1406 = vunpack.c.h.b16 %v425
    %v1407 = vunpack.c.l.b16 %v426
    %v1408 = vunpack.c.h.b16 %v426
    %v1409 = vpack.c.b16 %v773, %v769
    %v1410 = vpack.c.b16 %v774, %v770
    %v1411 = vpack.c.b16 %v775, %v771
    %v1412 = vpack.c.b16 %v776, %v772
    %v1413 = vpack.c.b16 %v781, %v777
    %v1414 = vpack.c.b16 %v782, %v778
    %v1415 = vpack.c.b16 %v783, %v779
    %v1416 = vpack.c.b16 %v784, %v780
    %v1417 = vpack.c.b16 %v789, %v785
    %v1418 = vpack.c.b16 %v790, %v786
    %v1419 = vpack.c.b16 %v791, %v787
    %v1420 = vpack.c.b16 %v792, %v788
    %v1421 = vpack.c.b16 %v797, %v793
    %v1422 = vpack.c.b16 %v798, %v794
    %v1423 = vpack.c.b16 %v799, %v795
    %v1424 = vpack.c.b16 %v800, %v796
    %v1425 = vpack.c.b16 %v805, %v801
    %v1426 = vpack.c.b16 %v806, %v802
    %v1427 = vpack.c.b16 %v807, %v803
    %v1428 = vpack.c.b16 %v808, %v804
    %v1429 = vpack.c.b16 %v813, %v809
    %v1430 = vpack.c.b16 %v814, %v810
    %v1431 = vpack.c.b16 %v815, %v811
    %v1432 = vpack.c.b16 %v816, %v812
    %v1433 = vpack.c.b16 %v821, %v817
    %v1434 = vpack.c.b16 %v822, %v818
    %v1435 = vpack.c.b16 %v823, %v819
    %v1436 = vpack.c.b16 %v824, %v820
    %v1437 = vpack.c.b16 %v829, %v825
    %v1438 = vpack.c.b16 %v830, %v826
    %v1439 = vpack.c.b16 %v831, %v827
    %v1440 = vpack.c.b16 %v832, %v828
    %v1441 = vpack.c.b16 %v837, %v833
    %v1442 = vpack.c.b16 %v838, %v834
    %v1443 = vpack.c.b16 %v839, %v835
    %v1444 = vpack.c.b16 %v840, %v836
    %v1445 = vpack.c.b16 %v845, %v841
    %v1446 = vpack.c.b16 %v846, %v842
    %v1447 = vpack.c.b16 %v847, %v843
    %v1448 = vpack.c.b16 %v848, %v844
    %v1449 = vpack.c.b16 %v853, %v849
    %v1450 = vpack.c.b16 %v854, %v850
    %v1451 = vpack.c.b16 %v855, %v851
    %v1452 = vpack.c.b16 %v856, %v852
    %v1453 = vpack.c.b16 %v861, %v857
    %v1454 = vpack.c.b16 %v862, %v858
    %v1455 = vpack.c.b16 %v863, %v859
    %v1456 = vpack.c.b16 %v864, %v860
    %v1457 = vpack.c.b16 %v869, %v865
    %v1458 = vpack.c.b16 %v870, %v866
    %v1459 = vpack.c.b16 %v871, %v867
    %v1460 = vpack.c.b16 %v872, %v868
    %v1461 = vpack.c.b16 %v877, %v873
    %v1462 = vpack.c.b16 %v878, %v874
    %v1463 = vpack.c.b16 %v879, %v875
    %v1464 = vpack.c.b16 %v880, %v876
    %v1465 = vpack.c.b16 %v885, %v881
    %v1466 = vpack.c.b16 %v886, %v882
    %v1467 = vpack.c.b16 %v887, %v883
    %v1468 = vpack.c.b16 %v888, %v884
    %v1469 = vpack.c.b16 %v893, %v889
    %v1470 = vpack.c.b16 %v894, %v890
    %v1471 = vpack.c.b16 %v895, %v891
    %v1472 = vpack.c.b16 %v896, %v892
    %v1473 = vpack.c.b16 %v901, %v897
    %v1474 = vpack.c.b16 %v902, %v898
    %v1475 = vpack.c.b16 %v903, %v899
    %v1476 = vpack.c.b16 %v904, %v900
    %v1477 = vpack.c.b16 %v909, %v905
    %v1478 = vpack.c.b16 %v910, %v906
    %v1479 = vpack.c.b16 %v911, %v907
    %v1480 = vpack.c.b16 %v912, %v908
    %v1481 = vpack.c.b16 %v917, %v913
    %v1482 = vpack.c.b16 %v918, %v914
    %v1483 = vpack.c.b16 %v919, %v915
    %v1484 = vpack.c.b16 %v920, %v916
    %v1485 = vpack.c.b16 %v925, %v921
    %v1486 = vpack.c.b16 %v926, %v922
    %v1487 = vpack.c.b16 %v927, %v923
    %v1488 = vpack.c.b16 %v928, %v924
    %v1489 = vpack.c.b16 %v933, %v929
    %v1490 = vpack.c.b16 %v934, %v930
    %v1491 = vpack.c.b16 %v935, %v931
    %v1492 = vpack.c.b16 %v936, %v932
    %v1493 = vpack.c.b16 %v941, %v937
    %v1494 = vpack.c.b16 %v942, %v938
    %v1495 = vpack.c.b16 %v943, %v939
    %v1496 = vpack.c.b16 %v944, %v940
    %v1497 = vpack.c.b16 %v949, %v945
    %v1498 = vpack.c.b16 %v950, %v946
    %v1499 = vpack.c.b16 %v951, %v947
    %v1500 = vpack.c.b16 %v952, %v948
    %v1501 = vpack.c.b16 %v957, %v953
    %v1502 = vpack.c.b16 %v958, %v954
    %v1503 = vpack.c.b16 %v959, %v955
    %v1504 = vpack.c.b16 %v960, %v956
    %v1505 = vpack.c.b16 %v965, %v961
    %v1506 = vpack.c.b16 %v966, %v962
    %v1507 = vpack.c.b16 %v967, %v963
    %v1508 = vpack.c.b16 %v968, %v964
    %v1509 = vpack.c.b16 %v973, %v969
    %v1510 = vpack.c.b16 %v974, %v970
    %v1511 = vpack.c.b16 %v975, %v971
    %v1512 = vpack.c.b16 %v976, %v972
    %v1513 = vpack.c.b16 %v981, %v977
    %v1514 = vpack.c.b16 %v982, %v978
    %v1515 = vpack.c.b16 %v983, %v979
    %v1516 = vpack.c.b16 %v984, %v980
    %v1517 = vpack.c.b16 %v989, %v985
    %v1518 = vpack.c.b16 %v990, %v986
    %v1519 = vpack.c.b16 %v991, %v987
    %v1520 = vpack.c.b16 %v992, %v988
    %v1521 = vpack.c.b16 %v997, %v993
    %v1522 = vpack.c.b16 %v998, %v994
    %v1523 = vpack.c.b16 %v999, %v995
    %v1524 = vpack.c.b16 %v1000, %v996
    %v1525 = vpack.c.b16 %v1005, %v1001
    %v1526 = vpack.c.b16 %v1006, %v1002
    %v1527 = vpack.c.b16 %v1007, %v1003
    %v1528 = vpack.c.b16 %v1008, %v1004
    %v1529 = vpack.c.b16 %v1013, %v1009
    %v1530 = vpack.c.b16 %v1014, %v1010
    %v1531 = vpack.c.b16 %v1015, %v1011
    %v1532 = vpack.c.b16 %v1016, %v1012
    %v1533 = vpack.c.b16 %v1021, %v1017
    %v1534 = vpack.c.b16 %v1022, %v1018
    %v1535 = vpack.c.b16 %v1023, %v1019
    %v1536 = vpack.c.b16 %v1024, %v1020
    %v1537 = vpack.c.b16 %v1029, %v1025
    %v1538 = vpack.c.b16 %v1030, %v1026
    %v1539 = vpack.c.b16 %v1031, %v1027
    %v1540 = vpack.c.b16 %v1032, %v1028
    %v1541 = vpack.c.b16 %v1037, %v1033
    %v1542 = vpack.c.b16 %v1038, %v1034
    %v1543 = vpack.c.b16 %v1039, %v1035
    %v1544 = vpack.c.b16 %v1040, %v1036
    %v1545 = vpack.c.b16 %v1045, %v1041
    %v1546 = vpack.c.b16 %v1046, %v1042
    %v1547 = vpack.c.b16 %v1047, %v1043
    %v1548 = vpack.c.b16 %v1048, %v1044
    %v1549 = vpack.c.b16 %v1053, %v1049
    %v1550 = vpack.c.b16 %v1054, %v1050
    %v1551 = vpack.c.b16 %v1055, %v1051
    %v1552 = vpack.c.b16 %v1056, %v1052
    %v1553 = vpack.c.b16 %v1061, %v1057
    %v1554 = vpack.c.b16 %v1062, %v1058
    %v1555 = vpack.c.b16 %v1063, %v1059
    %v1556 = vpack.c.b16 %v1064, %v1060
    %v1557 = vpack.c.b16 %v1069, %v1065
    %v1558 = vpack.c.b16 %v1070, %v1066
    %v1559 = vpack.c.b16 %v1071, %v1067
    %v1560 = vpack.c.b16 %v1072, %v1068
    %v1561 = vpack.c.b16 %v1077, %v1073
    %v1562 = vpack.c.b16 %v1078, %v1074
    %v1563 = vpack.c.b16 %v1079, %v1075
    %v1564 = vpack.c.b16 %v1080, %v1076
    %v1565 = vpack.c.b16 %v1085, %v1081
    %v1566 = vpack.c.b16 %v1086, %v1082
    %v1567 = vpack.c.b16 %v1087, %v1083
    %v1568 = vpack.c.b16 %v1088, %v1084
    %v1569 = vpack.c.b16 %v1093, %v1089
    %v1570 = vpack.c.b16 %v1094, %v1090
    %v1571 = vpack.c.b16 %v1095, %v1091
    %v1572 = vpack.c.b16 %v1096, %v1092
    %v1573 = vpack.c.b16 %v1101, %v1097
    %v1574 = vpack.c.b16 %v1102, %v1098
    %v1575 = vpack.c.b16 %v1103, %v1099
    %v1576 = vpack.c.b16 %v1104, %v1100
    %v1577 = vpack.c.b16 %v1109, %v1105
    %v1578 = vpack.c.b16 %v1110, %v1106
    %v1579 = vpack.c.b16 %v1111, %v1107
    %v1580 = vpack.c.b16 %v1112, %v1108
    %v1581 = vpack.c.b16 %v1117, %v1113
    %v1582 = vpack.c.b16 %v1118, %v1114
    %v1583 = vpack.c.b16 %v1119, %v1115
    %v1584 = vpack.c.b16 %v1120, %v1116
    %v1585 = vpack.c.b16 %v1125, %v1121
    %v1586 = vpack.c.b16 %v1126, %v1122
    %v1587 = vpack.c.b16 %v1127, %v1123
    %v1588 = vpack.c.b16 %v1128, %v1124
    %v1589 = vpack.c.b16 %v1133, %v1129
    %v1590 = vpack.c.b16 %v1134, %v1130
    %v1591 = vpack.c.b16 %v1135, %v1131
    %v1592 = vpack.c.b16 %v1136, %v1132
    %v1593 = vpack.c.b16 %v1141, %v1137
    %v1594 = vpack.c.b16 %v1142, %v1138
    %v1595 = vpack.c.b16 %v1143, %v1139
    %v1596 = vpack.c.b16 %v1144, %v1140
    %v1597 = vpack.c.b16 %v1149, %v1145
    %v1598 = vpack.c.b16 %v1150, %v1146
    %v1599 = vpack.c.b16 %v1151, %v1147
    %v1600 = vpack.c.b16 %v1152, %v1148
    %v1601 = vpack.c.b16 %v1157, %v1153
    %v1602 = vpack.c.b16 %v1158, %v1154
    %v1603 = vpack.c.b16 %v1159, %v1155
    %v1604 = vpack.c.b16 %v1160, %v1156
    %v1605 = vpack.c.b16 %v1165, %v1161
    %v1606 = vpack.c.b16 %v1166, %v1162
    %v1607 = vpack.c.b16 %v1167, %v1163
    %v1608 = vpack.c.b16 %v1168, %v1164
    %v1609 = vpack.c.b16 %v1173, %v1169
    %v1610 = vpack.c.b16 %v1174, %v1170
    %v1611 = vpack.c.b16 %v1175, %v1171
    %v1612 = vpack.c.b16 %v1176, %v1172
    %v1613 = vpack.c.b16 %v1181, %v1177
    %v1614 = vpack.c.b16 %v1182, %v1178
    %v1615 = vpack.c.b16 %v1183, %v1179
    %v1616 = vpack.c.b16 %v1184, %v1180
    %v1617 = vpack.c.b16 %v1189, %v1185
    %v1618 = vpack.c.b16 %v1190, %v1186
    %v1619 = vpack.c.b16 %v1191, %v1187
    %v1620 = vpack.c.b16 %v1192, %v1188
    %v1621 = vpack.c.b16 %v1197, %v1193
    %v1622 = vpack.c.b16 %v1198, %v1194
    %v1623 = vpack.c.b16 %v1199, %v1195
    %v1624 = vpack.c.b16 %v1200, %v1196
    %v1625 = vpack.c.b16 %v1205, %v1201
    %v1626 = vpack.c.b16 %v1206, %v1202
    %v1627 = vpack.c.b16 %v1207, %v1203
    %v1628 = vpack.c.b16 %v1208, %v1204
    %v1629 = vpack.c.b16 %v1213, %v1209
    %v1630 = vpack.c.b16 %v1214, %v1210
    %v1631 = vpack.c.b16 %v1215, %v1211
    %v1632 = vpack.c.b16 %v1216, %v1212
    %v1633 = vpack.c.b16 %v1221, %v1217
    %v1634 = vpack.c.b16 %v1222, %v1218
    %v1635 = vpack.c.b16 %v1223, %v1219
    %v1636 = vpack.c.b16 %v1224, %v1220
    %v1637 = vpack.c.b16 %v1229, %v1225
    %v1638 = vpack.c.b16 %v1230, %v1226
    %v1639 = vpack.c.b16 %v1231, %v1227
    %v1640 = vpack.c.b16 %v1232, %v1228
    %v1641 = vpack.c.b16 %v1237, %v1233
    %v1642 = vpack.c.b16 %v1238, %v1234
    %v1643 = vpack.c.b16 %v1239, %v1235
    %v1644 = vpack.c.b16 %v1240, %v1236
    %v1645 = vpack.c.b16 %v1245, %v1241
    %v1646 = vpack.c.b16 %v1246, %v1242
    %v1647 = vpack.c.b16 %v1247, %v1243
    %v1648 = vpack.c.b16 %v1248, %v1244
    %v1649 = vpack.c.b16 %v1253, %v1249
    %v1650 = vpack.c.b16 %v1254, %v1250
    %v1651 = vpack.c.b16 %v1255, %v1251
    %v1652 = vpack.c.b16 %v1256, %v1252
    %v1653 = vpack.c.b16 %v1261, %v1257
    %v1654 = vpack.c.b16 %v1262, %v1258
    %v1655 = vpack.c.b16 %v1263, %v1259
    %v1656 = vpack.c.b16 %v1264, %v1260
    %v1657 = vpack.c.b16 %v1269, %v1265
    %v1658 = vpack.c.b16 %v1270, %v1266
    %v1659 = vpack.c.b16 %v1271, %v1267
    %v1660 = vpack.c.b16 %v1272, %v1268
    %v1661 = vpack.c.b16 %v1277, %v1273
    %v1662 = vpack.c.b16 %v1278, %v1274
    %v1663 = vpack.c.b16 %v1279, %v1275
    %v1664 = vpack.c.b16 %v1280, %v1276
    %v1665 = vpack.c.b16 %v1285, %v1281
    %v1666 = vpack.c.b16 %v1286, %v1282
    %v1667 = vpack.c.b16 %v1287, %v1283
    %v1668 = vpack.c.b16 %v1288, %v1284
    %v1669 = vpack.c.b16 %v1293, %v1289
    %v1670 = vpack.c.b16 %v1294, %v1290
    %v1671 = vpack.c.b16 %v1295, %v1291
    %v1672 = vpack.c.b16 %v1296, %v1292
    %v1673 = vpack.c.b16 %v1301, %v1297
    %v1674 = vpack.c.b16 %v1302, %v1298
    %v1675 = vpack.c.b16 %v1303, %v1299
    %v1676 = vpack.c.b16 %v1304, %v1300
    %v1677 = vpack.c.b16 %v1309, %v1305
    %v1678 = vpack.c.b16 %v1310, %v1306
    %v1679 = vpack.c.b16 %v1311, %v1307
    %v1680 = vpack.c.b16 %v1312, %v1308
    %v1681 = vpack.c.b16 %v1317, %v1313
    %v1682 = vpack.c.b16 %v1318, %v1314
    %v1683 = vpack.c.b16 %v1319, %v1315
    %v1684 = vpack.c.b16 %v1320, %v1316
    %v1685 = vpack.c.b16 %v1325, %v1321
    %v1686 = vpack.c.b16 %v1326, %v1322
    %v1687 = vpack.c.b16 %v1327, %v1323
    %v1688 = vpack.c.b16 %v1328, %v1324
    %v1689 = vpack.c.b16 %v1333, %v1329
    %v1690 = vpack.c.b16 %v1334, %v1330
    %v1691 = vpack.c.b16 %v1335, %v1331
    %v1692 = vpack.c.b16 %v1336, %v1332
    %v1693 = vpack.c.b16 %v1341, %v1337
    %v1694 = vpack.c.b16 %v1342, %v1338
    %v1695 = vpack.c.b16 %v1343, %v1339
    %v1696 = vpack.c.b16 %v1344, %v1340
    %v1697 = vpack.c.b16 %v1349, %v1345
    %v1698 = vpack.c.b16 %v1350, %v1346
    %v1699 = vpack.c.b16 %v1351, %v1347
    %v1700 = vpack.c.b16 %v1352, %v1348
    %v1701 = vpack.c.b16 %v1357, %v1353
    %v1702 = vpack.c.b16 %v1358, %v1354
    %v1703 = vpack.c.b16 %v1359, %v1355
    %v1704 = vpack.c.b16 %v1360, %v1356
    %v1705 = vpack.c.b16 %v1365, %v1361
    %v1706 = vpack.c.b16 %v1366, %v1362
    %v1707 = vpack.c.b16 %v1367, %v1363
    %v1708 = vpack.c.b16 %v1368, %v1364
    %v1709 = vpack.c.b16 %v1373, %v1369
    %v1710 = vpack.c.b16 %v1374, %v1370
    %v1711 = vpack.c.b16 %v1375, %v1371
    %v1712 = vpack.c.b16 %v1376, %v1372
    %v1713 = vpack.c.b16 %v1381, %v1377
    %v1714 = vpack.c.b16 %v1382, %v1378
    %v1715 = vpack.c.b16 %v1383, %v1379
    %v1716 = vpack.c.b16 %v1384, %v1380
    %v1717 = vpack.c.b16 %v1389, %v1385
    %v1718 = vpack.c.b16 %v1390, %v1386
    %v1719 = vpack.c.b16 %v1391, %v1387
    %v1720 = vpack.c.b16 %v1392, %v1388
    %v1721 = vpack.c.b16 %v1397, %v1393
    %v1722 = vpack.c.b16 %v1398, %v1394
    %v1723 = vpack.c.b16 %v1399, %v1395
    %v1724 = vpack.c.b16 %v1400, %v1396
    %v1725 = vpack.c.b16 %v1405, %v1401
    %v1726 = vpack.c.b16 %v1406, %v1402
    %v1727 = vpack.c.b16 %v1407, %v1403
    %v1728 = vpack.c.b16 %v1408, %v1404
    %2049 = vmatprep.subr.bf16.mxu0 %v1410
    %2050 = vmatpush1.bf16.msra.mxu0 %v1409
    %2051 = vmatprep.subr.bf16.mxu0 %v1414
    %2052 = vmatpush1.bf16.msra.mxu0 %v1413
    %2053 = vmatprep.subr.bf16.mxu0 %v1418
    %2054 = vmatpush1.bf16.msra.mxu0 %v1417
    %2055 = vmatprep.subr.bf16.mxu0 %v1422
    %2056 = vmatpush1.bf16.msra.mxu0 %v1421
    %2057 = vmatprep.subr.bf16.mxu0 %v1426
    %2058 = vmatpush1.bf16.msra.mxu0 %v1425
    %2059 = vmatprep.subr.bf16.mxu0 %v1430
    %2060 = vmatpush1.bf16.msra.mxu0 %v1429
    %2061 = vmatprep.subr.bf16.mxu0 %v1434
    %2062 = vmatpush1.bf16.msra.mxu0 %v1433
    %2063 = vmatprep.subr.bf16.mxu0 %v1438
    %2064 = vmatpush1.bf16.msra.mxu0 %v1437
    %2065 = vmatprep.subr.bf16.mxu0 %v1442
    %2066 = vmatpush1.bf16.msra.mxu0 %v1441
    %2067 = vmatprep.subr.bf16.mxu0 %v1446
    %2068 = vmatpush1.bf16.msra.mxu0 %v1445
    %2069 = vmatprep.subr.bf16.mxu0 %v1450
    %2070 = vmatpush1.bf16.msra.mxu0 %v1449
    %2071 = vmatprep.subr.bf16.mxu0 %v1454
    %2072 = vmatpush1.bf16.msra.mxu0 %v1453
    %2073 = vmatprep.subr.bf16.mxu0 %v1458
    %2074 = vmatpush1.bf16.msra.mxu0 %v1457
    %2075 = vmatprep.subr.bf16.mxu0 %v1462
    %2076 = vmatpush1.bf16.msra.mxu0 %v1461
    %2077 = vmatprep.subr.bf16.mxu0 %v1466
    %2078 = vmatpush1.bf16.msra.mxu0 %v1465
    %2079 = vmatprep.subr.bf16.mxu0 %v1470
    %2080 = vmatpush1.bf16.msra.mxu0 %v1469
    %2081 = vmatprep.mubr.bf16.mxu0 %v98
    %2082 = vmatmul.mubr.bf16.gmra.mrb[0].mxu0 %v97
    %v2083 = vpop.f32.mrb[0].mxu0
    %v2084 = vadd.f32 %v432, %v2083
    %v2085 = vpop.f32.mrb[0].mxu0
    %v2086 = vadd.f32 %v436, %v2085
    %v2087 = vpop.f32.mrb[0].mxu0
    %v2088 = vpop.f32.mrb[0].mxu0
    %2089 = vdwg.mxu0
    %2090 = vmatprep.subr.bf16.mxu0 %v1474
    %2091 = vmatpush1.bf16.msra.mxu0 %v1473
    %2092 = vmatprep.subr.bf16.mxu0 %v1478
    %2093 = vmatpush1.bf16.msra.mxu0 %v1477
    %2094 = vmatprep.subr.bf16.mxu0 %v1482
    %2095 = vmatpush1.bf16.msra.mxu0 %v1481
    %2096 = vmatprep.subr.bf16.mxu0 %v1486
    %2097 = vmatpush1.bf16.msra.mxu0 %v1485
    %2098 = vmatprep.subr.bf16.mxu0 %v1490
    %2099 = vmatpush1.bf16.msra.mxu0 %v1489
    %2100 = vmatprep.subr.bf16.mxu0 %v1494
    %2101 = vmatpush1.bf16.msra.mxu0 %v1493
    %2102 = vmatprep.subr.bf16.mxu0 %v1498
    %2103 = vmatpush1.bf16.msra.mxu0 %v1497
    %2104 = vmatprep.subr.bf16.mxu0 %v1502
    %2105 = vmatpush1.bf16.msra.mxu0 %v1501
    %2106 = vmatprep.subr.bf16.mxu0 %v1506
    %2107 = vmatpush1.bf16.msra.mxu0 %v1505
    %2108 = vmatprep.subr.bf16.mxu0 %v1510
    %2109 = vmatpush1.bf16.msra.mxu0 %v1509
    %2110 = vmatprep.subr.bf16.mxu0 %v1514
    %2111 = vmatpush1.bf16.msra.mxu0 %v1513
    %2112 = vmatprep.subr.bf16.mxu0 %v1518
    %2113 = vmatpush1.bf16.msra.mxu0 %v1517
    %2114 = vmatprep.subr.bf16.mxu0 %v1522
    %2115 = vmatpush1.bf16.msra.mxu0 %v1521
    %2116 = vmatprep.subr.bf16.mxu0 %v1526
    %2117 = vmatpush1.bf16.msra.mxu0 %v1525
    %2118 = vmatprep.subr.bf16.mxu0 %v1530
    %2119 = vmatpush1.bf16.msra.mxu0 %v1529
    %2120 = vmatprep.subr.bf16.mxu0 %v1534
    %2121 = vmatpush1.bf16.msra.mxu0 %v1533
    %2122 = vmatprep.mubr.bf16.mxu0 %v100
    %2123 = vmatmul.mubr.bf16.gmra.mrb[0].mxu0 %v99
    %v2124 = vpop.f32.mrb[0].mxu0
    %v2125 = vadd.f32 %v2084, %v2124
    %v2126 = vpop.f32.mrb[0].mxu0
    %v2127 = vadd.f32 %v2086, %v2126
    %v2128 = vpop.f32.mrb[0].mxu0
    %v2129 = vpop.f32.mrb[0].mxu0
    %2130 = vdwg.mxu0
    %2131 = vmatprep.subr.bf16.mxu0 %v1538
    %2132 = vmatpush1.bf16.msra.mxu0 %v1537
    %2133 = vmatprep.subr.bf16.mxu0 %v1542
    %2134 = vmatpush1.bf16.msra.mxu0 %v1541
    %2135 = vmatprep.subr.bf16.mxu0 %v1546
    %2136 = vmatpush1.bf16.msra.mxu0 %v1545
    %2137 = vmatprep.subr.bf16.mxu0 %v1550
    %2138 = vmatpush1.bf16.msra.mxu0 %v1549
    %2139 = vmatprep.subr.bf16.mxu0 %v1554
    %2140 = vmatpush1.bf16.msra.mxu0 %v1553
    %2141 = vmatprep.subr.bf16.mxu0 %v1558
    %2142 = vmatpush1.bf16.msra.mxu0 %v1557
    %2143 = vmatprep.subr.bf16.mxu0 %v1562
    %2144 = vmatpush1.bf16.msra.mxu0 %v1561
    %2145 = vmatprep.subr.bf16.mxu0 %v1566
    %2146 = vmatpush1.bf16.msra.mxu0 %v1565
    %2147 = vmatprep.subr.bf16.mxu0 %v1570
    %2148 = vmatpush1.bf16.msra.mxu0 %v1569
    %2149 = vmatprep.subr.bf16.mxu0 %v1574
    %2150 = vmatpush1.bf16.msra.mxu0 %v1573
    %2151 = vmatprep.subr.bf16.mxu0 %v1578
    %2152 = vmatpush1.bf16.msra.mxu0 %v1577
    %2153 = vmatprep.subr.bf16.mxu0 %v1582
    %2154 = vmatpush1.bf16.msra.mxu0 %v1581
    %2155 = vmatprep.subr.bf16.mxu0 %v1586
    %2156 = vmatpush1.bf16.msra.mxu0 %v1585
    %2157 = vmatprep.subr.bf16.mxu0 %v1590
    %2158 = vmatpush1.bf16.msra.mxu0 %v1589
    %2159 = vmatprep.subr.bf16.mxu0 %v1594
    %2160 = vmatpush1.bf16.msra.mxu0 %v1593
    %2161 = vmatprep.subr.bf16.mxu0 %v1598
    %2162 = vmatpush1.bf16.msra.mxu0 %v1597
    %2163 = vmatprep.mubr.bf16.mxu0 %v102
    %2164 = vmatmul.mubr.bf16.gmra.mrb[0].mxu0 %v101
    %v2165 = vpop.f32.mrb[0].mxu0
    %v2166 = vadd.f32 %v2125, %v2165
    %v2167 = vpop.f32.mrb[0].mxu0
    %v2168 = vadd.f32 %v2127, %v2167
    %v2169 = vpop.f32.mrb[0].mxu0
    %v2170 = vpop.f32.mrb[0].mxu0
    %2171 = vdwg.mxu0
    %2172 = vmatprep.subr.bf16.mxu0 %v1602
    %2173 = vmatpush1.bf16.msra.mxu0 %v1601
    %2174 = vmatprep.subr.bf16.mxu0 %v1606
    %2175 = vmatpush1.bf16.msra.mxu0 %v1605
    %2176 = vmatprep.subr.bf16.mxu0 %v1610
    %2177 = vmatpush1.bf16.msra.mxu0 %v1609
    %2178 = vmatprep.subr.bf16.mxu0 %v1614
    %2179 = vmatpush1.bf16.msra.mxu0 %v1613
    %2180 = vmatprep.subr.bf16.mxu0 %v1618
    %2181 = vmatpush1.bf16.msra.mxu0 %v1617
    %2182 = vmatprep.subr.bf16.mxu0 %v1622
    %2183 = vmatpush1.bf16.msra.mxu0 %v1621
    %2184 = vmatprep.subr.bf16.mxu0 %v1626
    %2185 = vmatpush1.bf16.msra.mxu0 %v1625
    %2186 = vmatprep.subr.bf16.mxu0 %v1630
    %2187 = vmatpush1.bf16.msra.mxu0 %v1629
    %2188 = vmatprep.subr.bf16.mxu0 %v1634
    %2189 = vmatpush1.bf16.msra.mxu0 %v1633
    %2190 = vmatprep.subr.bf16.mxu0 %v1638
    %2191 = vmatpush1.bf16.msra.mxu0 %v1637
    %2192 = vmatprep.subr.bf16.mxu0 %v1642
    %2193 = vmatpush1.bf16.msra.mxu0 %v1641
    %2194 = vmatprep.subr.bf16.mxu0 %v1646
    %2195 = vmatpush1.bf16.msra.mxu0 %v1645
    %2196 = vmatprep.subr.bf16.mxu0 %v1650
    %2197 = vmatpush1.bf16.msra.mxu0 %v1649
    %2198 = vmatprep.subr.bf16.mxu0 %v1654
    %2199 = vmatpush1.bf16.msra.mxu0 %v1653
    %2200 = vmatprep.subr.bf16.mxu0 %v1658
    %2201 = vmatpush1.bf16.msra.mxu0 %v1657
    %2202 = vmatprep.subr.bf16.mxu0 %v1662
    %2203 = vmatpush1.bf16.msra.mxu0 %v1661
    %2204 = vmatprep.mubr.bf16.mxu0 %v104
    %2205 = vmatmul.mubr.bf16.gmra.mrb[0].mxu0 %v103
    %v2206 = vpop.f32.mrb[0].mxu0
    %v2207 = vadd.f32 %v2166, %v2206
    %v2208 = vpop.f32.mrb[0].mxu0
    %v2209 = vadd.f32 %v2168, %v2208
    %v2210 = vpop.f32.mrb[0].mxu0
    %v2211 = vpop.f32.mrb[0].mxu0
    %2212 = vdwg.mxu0
    %2213 = vmatprep.subr.bf16.mxu0 %v1666
    %2214 = vmatpush1.bf16.msra.mxu0 %v1665
    %2215 = vmatprep.subr.bf16.mxu0 %v1670
    %2216 = vmatpush1.bf16.msra.mxu0 %v1669
    %2217 = vmatprep.subr.bf16.mxu0 %v1674
    %2218 = vmatpush1.bf16.msra.mxu0 %v1673
    %2219 = vmatprep.subr.bf16.mxu0 %v1678
    %2220 = vmatpush1.bf16.msra.mxu0 %v1677
    %2221 = vmatprep.subr.bf16.mxu0 %v1682
    %2222 = vmatpush1.bf16.msra.mxu0 %v1681
    %2223 = vmatprep.subr.bf16.mxu0 %v1686
    %2224 = vmatpush1.bf16.msra.mxu0 %v1685
    %2225 = vmatprep.subr.bf16.mxu0 %v1690
    %2226 = vmatpush1.bf16.msra.mxu0 %v1689
    %2227 = vmatprep.subr.bf16.mxu0 %v1694
    %2228 = vmatpush1.bf16.msra.mxu0 %v1693
    %2229 = vmatprep.subr.bf16.mxu0 %v1698
    %2230 = vmatpush1.bf16.msra.mxu0 %v1697
    %2231 = vmatprep.subr.bf16.mxu0 %v1702
    %2232 = vmatpush1.bf16.msra.mxu0 %v1701
    %2233 = vmatprep.subr.bf16.mxu0 %v1706
    %2234 = vmatpush1.bf16.msra.mxu0 %v1705
    %2235 = vmatprep.subr.bf16.mxu0 %v1710
    %2236 = vmatpush1.bf16.msra.mxu0 %v1709
    %2237 = vmatprep.subr.bf16.mxu0 %v1714
    %2238 = vmatpush1.bf16.msra.mxu0 %v1713
    %2239 = vmatprep.subr.bf16.mxu0 %v1718
    %2240 = vmatpush1.bf16.msra.mxu0 %v1717
    %2241 = vmatprep.subr.bf16.mxu0 %v1722
    %2242 = vmatpush1.bf16.msra.mxu0 %v1721
    %2243 = vmatprep.subr.bf16.mxu0 %v1726
    %2244 = vmatpush1.bf16.msra.mxu0 %v1725
    %2245 = vmatprep.mubr.bf16.mxu0 %v106
    %2246 = vmatmul.mubr.bf16.gmra.mrb[0].mxu0 %v105
    %v2247 = vpop.f32.mrb[0].mxu0
    %v2248 = vadd.f32 %v2207, %v2247
    %v2249 = vpop.f32.mrb[0].mxu0
    %v2250 = vadd.f32 %v2209, %v2249
    %v2251 = vpop.f32.mrb[0].mxu0
    %v2252 = vpop.f32.mrb[0].mxu0
    %2253 = vdwg.mxu0
    %2254 = vmatprep.subr.bf16.mxu0 %v1412
    %2255 = vmatpush1.bf16.msra.mxu0 %v1411
    %2256 = vmatprep.subr.bf16.mxu0 %v1416
    %2257 = vmatpush1.bf16.msra.mxu0 %v1415
    %2258 = vmatprep.subr.bf16.mxu0 %v1420
    %2259 = vmatpush1.bf16.msra.mxu0 %v1419
    %2260 = vmatprep.subr.bf16.mxu0 %v1424
    %2261 = vmatpush1.bf16.msra.mxu0 %v1423
    %2262 = vmatprep.subr.bf16.mxu0 %v1428
    %2263 = vmatpush1.bf16.msra.mxu0 %v1427
    %2264 = vmatprep.subr.bf16.mxu0 %v1432
    %2265 = vmatpush1.bf16.msra.mxu0 %v1431
    %2266 = vmatprep.subr.bf16.mxu0 %v1436
    %2267 = vmatpush1.bf16.msra.mxu0 %v1435
    %2268 = vmatprep.subr.bf16.mxu0 %v1440
    %2269 = vmatpush1.bf16.msra.mxu0 %v1439
    %2270 = vmatprep.subr.bf16.mxu0 %v1444
    %2271 = vmatpush1.bf16.msra.mxu0 %v1443
    %2272 = vmatprep.subr.bf16.mxu0 %v1448
    %2273 = vmatpush1.bf16.msra.mxu0 %v1447
    %2274 = vmatprep.subr.bf16.mxu0 %v1452
    %2275 = vmatpush1.bf16.msra.mxu0 %v1451
    %2276 = vmatprep.subr.bf16.mxu0 %v1456
    %2277 = vmatpush1.bf16.msra.mxu0 %v1455
    %2278 = vmatprep.subr.bf16.mxu0 %v1460
    %2279 = vmatpush1.bf16.msra.mxu0 %v1459
    %2280 = vmatprep.subr.bf16.mxu0 %v1464
    %2281 = vmatpush1.bf16.msra.mxu0 %v1463
    %2282 = vmatprep.subr.bf16.mxu0 %v1468
    %2283 = vmatpush1.bf16.msra.mxu0 %v1467
    %2284 = vmatprep.subr.bf16.mxu0 %v1472
    %2285 = vmatpush1.bf16.msra.mxu0 %v1471
    %2286 = vmatprep.mubr.bf16.mxu0 %v98
    %2287 = vmatmul.mubr.bf16.gmra.mrb[0].mxu0 %v97
    %v2288 = vpop.f32.mrb[0].mxu0
    %v2289 = vadd.f32 %v440, %v2288
    %v2290 = vpop.f32.mrb[0].mxu0
    %v2291 = vadd.f32 %v444, %v2290
    %v2292 = vpop.f32.mrb[0].mxu0
    %v2293 = vpop.f32.mrb[0].mxu0
    %2294 = vdwg.mxu0
    %2295 = vmatprep.subr.bf16.mxu0 %v1476
    %2296 = vmatpush1.bf16.msra.mxu0 %v1475
    %2297 = vmatprep.subr.bf16.mxu0 %v1480
    %2298 = vmatpush1.bf16.msra.mxu0 %v1479
    %2299 = vmatprep.subr.bf16.mxu0 %v1484
    %2300 = vmatpush1.bf16.msra.mxu0 %v1483
    %2301 = vmatprep.subr.bf16.mxu0 %v1488
    %2302 = vmatpush1.bf16.msra.mxu0 %v1487
    %2303 = vmatprep.subr.bf16.mxu0 %v1492
    %2304 = vmatpush1.bf16.msra.mxu0 %v1491
    %2305 = vmatprep.subr.bf16.mxu0 %v1496
    %2306 = vmatpush1.bf16.msra.mxu0 %v1495
    %2307 = vmatprep.subr.bf16.mxu0 %v1500
    %2308 = vmatpush1.bf16.msra.mxu0 %v1499
    %2309 = vmatprep.subr.bf16.mxu0 %v1504
    %2310 = vmatpush1.bf16.msra.mxu0 %v1503
    %2311 = vmatprep.subr.bf16.mxu0 %v1508
    %2312 = vmatpush1.bf16.msra.mxu0 %v1507
    %2313 = vmatprep.subr.bf16.mxu0 %v1512
    %2314 = vmatpush1.bf16.msra.mxu0 %v1511
    %2315 = vmatprep.subr.bf16.mxu0 %v1516
    %2316 = vmatpush1.bf16.msra.mxu0 %v1515
    %2317 = vmatprep.subr.bf16.mxu0 %v1520
    %2318 = vmatpush1.bf16.msra.mxu0 %v1519
    %2319 = vmatprep.subr.bf16.mxu0 %v1524
    %2320 = vmatpush1.bf16.msra.mxu0 %v1523
    %2321 = vmatprep.subr.bf16.mxu0 %v1528
    %2322 = vmatpush1.bf16.msra.mxu0 %v1527
    %2323 = vmatprep.subr.bf16.mxu0 %v1532
    %2324 = vmatpush1.bf16.msra.mxu0 %v1531
    %2325 = vmatprep.subr.bf16.mxu0 %v1536
    %2326 = vmatpush1.bf16.msra.mxu0 %v1535
    %2327 = vmatprep.mubr.bf16.mxu0 %v100
    %2328 = vmatmul.mubr.bf16.gmra.mrb[0].mxu0 %v99
    %v2329 = vpop.f32.mrb[0].mxu0
    %v2330 = vadd.f32 %v2289, %v2329
    %v2331 = vpop.f32.mrb[0].mxu0
    %v2332 = vadd.f32 %v2291, %v2331
    %v2333 = vpop.f32.mrb[0].mxu0
    %v2334 = vpop.f32.mrb[0].mxu0
    %2335 = vdwg.mxu0
    %2336 = vmatprep.subr.bf16.mxu0 %v1540
    %2337 = vmatpush1.bf16.msra.mxu0 %v1539
    %2338 = vmatprep.subr.bf16.mxu0 %v1544
    %2339 = vmatpush1.bf16.msra.mxu0 %v1543
    %2340 = vmatprep.subr.bf16.mxu0 %v1548
    %2341 = vmatpush1.bf16.msra.mxu0 %v1547
    %2342 = vmatprep.subr.bf16.mxu0 %v1552
    %2343 = vmatpush1.bf16.msra.mxu0 %v1551
    %2344 = vmatprep.subr.bf16.mxu0 %v1556
    %2345 = vmatpush1.bf16.msra.mxu0 %v1555
    %2346 = vmatprep.subr.bf16.mxu0 %v1560
    %2347 = vmatpush1.bf16.msra.mxu0 %v1559
    %2348 = vmatprep.subr.bf16.mxu0 %v1564
    %2349 = vmatpush1.bf16.msra.mxu0 %v1563
    %2350 = vmatprep.subr.bf16.mxu0 %v1568
    %2351 = vmatpush1.bf16.msra.mxu0 %v1567
    %2352 = vmatprep.subr.bf16.mxu0 %v1572
    %2353 = vmatpush1.bf16.msra.mxu0 %v1571
    %2354 = vmatprep.subr.bf16.mxu0 %v1576
    %2355 = vmatpush1.bf16.msra.mxu0 %v1575
    %2356 = vmatprep.subr.bf16.mxu0 %v1580
    %2357 = vmatpush1.bf16.msra.mxu0 %v1579
    %2358 = vmatprep.subr.bf16.mxu0 %v1584
    %2359 = vmatpush1.bf16.msra.mxu0 %v1583
    %2360 = vmatprep.subr.bf16.mxu0 %v1588
    %2361 = vmatpush1.bf16.msra.mxu0 %v1587
    %2362 = vmatprep.subr.bf16.mxu0 %v1592
    %2363 = vmatpush1.bf16.msra.mxu0 %v1591
    %2364 = vmatprep.subr.bf16.mxu0 %v1596
    %2365 = vmatpush1.bf16.msra.mxu0 %v1595
    %2366 = vmatprep.subr.bf16.mxu0 %v1600
    %2367 = vmatpush1.bf16.msra.mxu0 %v1599
    %2368 = vmatprep.mubr.bf16.mxu0 %v102
    %2369 = vmatmul.mubr.bf16.gmra.mrb[0].mxu0 %v101
    %v2370 = vpop.f32.mrb[0].mxu0
    %v2371 = vadd.f32 %v2330, %v2370
    %v2372 = vpop.f32.mrb[0].mxu0
    %v2373 = vadd.f32 %v2332, %v2372
    %v2374 = vpop.f32.mrb[0].mxu0
    %v2375 = vpop.f32.mrb[0].mxu0
    %2376 = vdwg.mxu0
    %2377 = vmatprep.subr.bf16.mxu0 %v1604
    %2378 = vmatpush1.bf16.msra.mxu0 %v1603
    %2379 = vmatprep.subr.bf16.mxu0 %v1608
    %2380 = vmatpush1.bf16.msra.mxu0 %v1607
    %2381 = vmatprep.subr.bf16.mxu0 %v1612
    %2382 = vmatpush1.bf16.msra.mxu0 %v1611
    %2383 = vmatprep.subr.bf16.mxu0 %v1616
    %2384 = vmatpush1.bf16.msra.mxu0 %v1615
    %2385 = vmatprep.subr.bf16.mxu0 %v1620
    %2386 = vmatpush1.bf16.msra.mxu0 %v1619
    %2387 = vmatprep.subr.bf16.mxu0 %v1624
    %2388 = vmatpush1.bf16.msra.mxu0 %v1623
    %2389 = vmatprep.subr.bf16.mxu0 %v1628
    %2390 = vmatpush1.bf16.msra.mxu0 %v1627
    %2391 = vmatprep.subr.bf16.mxu0 %v1632
    %2392 = vmatpush1.bf16.msra.mxu0 %v1631
    %2393 = vmatprep.subr.bf16.mxu0 %v1636
    %2394 = vmatpush1.bf16.msra.mxu0 %v1635
    %2395 = vmatprep.subr.bf16.mxu0 %v1640
    %2396 = vmatpush1.bf16.msra.mxu0 %v1639
    %2397 = vmatprep.subr.bf16.mxu0 %v1644
    %2398 = vmatpush1.bf16.msra.mxu0 %v1643
    %2399 = vmatprep.subr.bf16.mxu0 %v1648
    %2400 = vmatpush1.bf16.msra.mxu0 %v1647
    %2401 = vmatprep.subr.bf16.mxu0 %v1652
    %2402 = vmatpush1.bf16.msra.mxu0 %v1651
    %2403 = vmatprep.subr.bf16.mxu0 %v1656
    %2404 = vmatpush1.bf16.msra.mxu0 %v1655
    %2405 = vmatprep.subr.bf16.mxu0 %v1660
    %2406 = vmatpush1.bf16.msra.mxu0 %v1659
    %2407 = vmatprep.subr.bf16.mxu0 %v1664
    %2408 = vmatpush1.bf16.msra.mxu0 %v1663
    %2409 = vmatprep.mubr.bf16.mxu0 %v104
    %2410 = vmatmul.mubr.bf16.gmra.mrb[0].mxu0 %v103
    %v2411 = vpop.f32.mrb[0].mxu0
    %v2412 = vadd.f32 %v2371, %v2411
    %v2413 = vpop.f32.mrb[0].mxu0
    %v2414 = vadd.f32 %v2373, %v2413
    %v2415 = vpop.f32.mrb[0].mxu0
    %v2416 = vpop.f32.mrb[0].mxu0
    %2417 = vdwg.mxu0
    %2418 = vmatprep.subr.bf16.mxu0 %v1668
    %2419 = vmatpush1.bf16.msra.mxu0 %v1667
    %2420 = vmatprep.subr.bf16.mxu0 %v1672
    %2421 = vmatpush1.bf16.msra.mxu0 %v1671
    %2422 = vmatprep.subr.bf16.mxu0 %v1676
    %2423 = vmatpush1.bf16.msra.mxu0 %v1675
    %2424 = vmatprep.subr.bf16.mxu0 %v1680
    %2425 = vmatpush1.bf16.msra.mxu0 %v1679
    %2426 = vmatprep.subr.bf16.mxu0 %v1684
    %2427 = vmatpush1.bf16.msra.mxu0 %v1683
    %2428 = vmatprep.subr.bf16.mxu0 %v1688
    %2429 = vmatpush1.bf16.msra.mxu0 %v1687
    %2430 = vmatprep.subr.bf16.mxu0 %v1692
    %2431 = vmatpush1.bf16.msra.mxu0 %v1691
    %2432 = vmatprep.subr.bf16.mxu0 %v1696
    %2433 = vmatpush1.bf16.msra.mxu0 %v1695
    %2434 = vmatprep.subr.bf16.mxu0 %v1700
    %2435 = vmatpush1.bf16.msra.mxu0 %v1699
    %2436 = vmatprep.subr.bf16.mxu0 %v1704
    %2437 = vmatpush1.bf16.msra.mxu0 %v1703
    %2438 = vmatprep.subr.bf16.mxu0 %v1708
    %2439 = vmatpush1.bf16.msra.mxu0 %v1707
    %2440 = vmatprep.subr.bf16.mxu0 %v1712
    %2441 = vmatpush1.bf16.msra.mxu0 %v1711
    %2442 = vmatprep.subr.bf16.mxu0 %v1716
    %2443 = vmatpush1.bf16.msra.mxu0 %v1715
    %2444 = vmatprep.subr.bf16.mxu0 %v1720
    %2445 = vmatpush1.bf16.msra.mxu0 %v1719
    %2446 = vmatprep.subr.bf16.mxu0 %v1724
    %2447 = vmatpush1.bf16.msra.mxu0 %v1723
    %2448 = vmatprep.subr.bf16.mxu0 %v1728
    %2449 = vmatpush1.bf16.msra.mxu0 %v1727
    %2450 = vmatprep.mubr.bf16.mxu0 %v106
    %2451 = vmatmul.mubr.bf16.gmra.mrb[0].mxu0 %v105
    %v2452 = vpop.f32.mrb[0].mxu0
    %v2453 = vadd.f32 %v2412, %v2452
    %v2454 = vpop.f32.mrb[0].mxu0
    %v2455 = vadd.f32 %v2414, %v2454
    %v2456 = vpop.f32.mrb[0].mxu0
    %v2457 = vpop.f32.mrb[0].mxu0
    %2458 = vdwg.mxu0
    %v2459 = vtanh.pop %v2248
    %v2460 = vtanh.pop %v2250
    %v2461 = vtanh.pop %v2453
    %v2462 = vtanh.pop %v2455
    %2463 = vst [vmem:[#allocation12] sm:$0xff] %v2459
    %2464 = vst [vmem:[#allocation12 + $0x8] sm:$0xff] %v2460
    %2465 = vst [vmem:[#allocation12 + $0x10] sm:$0xff] %v2461
    %2466 = vst [vmem:[#allocation12 + $0x18] sm:$0xff] %v2462
    %v2467 = vpack.c.bf16 %v2459, %v2459
    %v2468 = vpack.c.bf16 %v2460, %v2460
    %v2469 = vpack.c.bf16 %v2461, %v2461
    %v2470 = vpack.c.bf16 %v2462, %v2462
    %v2471 = vld [vmem:[#allocation8] sm:$0xf]
    %v2472 = vld [vmem:[#allocation8 + $0x4] sm:$0xf]
    %v2473 = vld [vmem:[#allocation8 + $0x8] sm:$0xf]
    %v2474 = vld [vmem:[#allocation8 + $0xc] sm:$0xf]
    %v2475 = vld [vmem:[#allocation8 + $0x10] sm:$0xf]
    %v2476 = vld [vmem:[#allocation8 + $0x14] sm:$0xf]
    %v2477 = vld [vmem:[#allocation8 + $0x18] sm:$0xf]
    %v2478 = vld [vmem:[#allocation8 + $0x1c] sm:$0xf]
    %v2479 = vld [vmem:[#allocation8 + $0x20] sm:$0xf]
    %v2480 = vld [vmem:[#allocation8 + $0x24] sm:$0xf]
    %v2481 = vld [vmem:[#allocation8 + $0x28] sm:$0xf]
    %v2482 = vld [vmem:[#allocation8 + $0x2c] sm:$0xf]
    %v2483 = vld [vmem:[#allocation8 + $0x30] sm:$0xf]
    %v2484 = vld [vmem:[#allocation8 + $0x34] sm:$0xf]
    %v2485 = vld [vmem:[#allocation8 + $0x38] sm:$0xf]
    %v2486 = vld [vmem:[#allocation8 + $0x3c] sm:$0xf]
    %v2487 = vld [vmem:[#allocation8 + $0x40] sm:$0xf]
    %v2488 = vld [vmem:[#allocation8 + $0x44] sm:$0xf]
    %v2489 = vld [vmem:[#allocation8 + $0x48] sm:$0xf]
    %v2490 = vld [vmem:[#allocation8 + $0x4c] sm:$0xf]
    %v2491 = vld [vmem:[#allocation8 + $0x50] sm:$0xf]
    %v2492 = vld [vmem:[#allocation8 + $0x54] sm:$0xf]
    %v2493 = vld [vmem:[#allocation8 + $0x58] sm:$0xf]
    %v2494 = vld [vmem:[#allocation8 + $0x5c] sm:$0xf]
    %v2495 = vld [vmem:[#allocation8 + $0x60] sm:$0xf]
    %v2496 = vld [vmem:[#allocation8 + $0x64] sm:$0xf]
    %v2497 = vld [vmem:[#allocation8 + $0x68] sm:$0xf]
    %v2498 = vld [vmem:[#allocation8 + $0x6c] sm:$0xf]
    %v2499 = vld [vmem:[#allocation8 + $0x70] sm:$0xf]
    %v2500 = vld [vmem:[#allocation8 + $0x74] sm:$0xf]
    %v2501 = vld [vmem:[#allocation8 + $0x78] sm:$0xf]
    %v2502 = vld [vmem:[#allocation8 + $0x7c] sm:$0xf]
    %v2503 = vld [vmem:[#allocation8 + $0x80] sm:$0xf]
    %v2504 = vld [vmem:[#allocation8 + $0x84] sm:$0xf]
    %v2505 = vld [vmem:[#allocation8 + $0x88] sm:$0xf]
    %v2506 = vld [vmem:[#allocation8 + $0x8c] sm:$0xf]
    %v2507 = vld [vmem:[#allocation8 + $0x90] sm:$0xf]
    %v2508 = vld [vmem:[#allocation8 + $0x94] sm:$0xf]
    %v2509 = vld [vmem:[#allocation8 + $0x98] sm:$0xf]
    %v2510 = vld [vmem:[#allocation8 + $0x9c] sm:$0xf]
    %v2511 = vld [vmem:[#allocation8 + $0xa0] sm:$0xf]
    %v2512 = vld [vmem:[#allocation8 + $0xa4] sm:$0xf]
    %v2513 = vld [vmem:[#allocation8 + $0xa8] sm:$0xf]
    %v2514 = vld [vmem:[#allocation8 + $0xac] sm:$0xf]
    %v2515 = vld [vmem:[#allocation8 + $0xb0] sm:$0xf]
    %v2516 = vld [vmem:[#allocation8 + $0xb4] sm:$0xf]
    %v2517 = vld [vmem:[#allocation8 + $0xb8] sm:$0xf]
    %v2518 = vld [vmem:[#allocation8 + $0xbc] sm:$0xf]
    %v2519 = vld [vmem:[#allocation8 + $0xc0] sm:$0xf]
    %v2520 = vld [vmem:[#allocation8 + $0xc4] sm:$0xf]
    %v2521 = vld [vmem:[#allocation8 + $0xc8] sm:$0xf]
    %v2522 = vld [vmem:[#allocation8 + $0xcc] sm:$0xf]
    %v2523 = vld [vmem:[#allocation8 + $0xd0] sm:$0xf]
    %v2524 = vld [vmem:[#allocation8 + $0xd4] sm:$0xf]
    %v2525 = vld [vmem:[#allocation8 + $0xd8] sm:$0xf]
    %v2526 = vld [vmem:[#allocation8 + $0xdc] sm:$0xf]
    %v2527 = vld [vmem:[#allocation8 + $0xe0] sm:$0xf]
    %v2528 = vld [vmem:[#allocation8 + $0xe4] sm:$0xf]
    %v2529 = vld [vmem:[#allocation8 + $0xe8] sm:$0xf]
    %v2530 = vld [vmem:[#allocation8 + $0xec] sm:$0xf]
    %v2531 = vld [vmem:[#allocation8 + $0xf0] sm:$0xf]
    %v2532 = vld [vmem:[#allocation8 + $0xf4] sm:$0xf]
    %v2533 = vld [vmem:[#allocation8 + $0xf8] sm:$0xf]
    %v2534 = vld [vmem:[#allocation8 + $0xfc] sm:$0xf]
    %v2535 = vld [vmem:[#allocation10] sm:$0x1]
    %v2537 = vlaneseq
    %v2538 = vshrl.u32 %v2537, 7
    %v2539 = vsub.s32 0, %v2538
    %v2540 = vrot.slane %v2535, %v2539
    %v2606 = vunpack.c.l.b16 %v2471
    %v2607 = vunpack.c.l.b16 %v2472
    %v2608 = vunpack.c.l.b16 %v2473
    %v2609 = vunpack.c.l.b16 %v2474
    %v2610 = vunpack.c.l.b16 %v2475
    %v2611 = vunpack.c.l.b16 %v2476
    %v2612 = vunpack.c.l.b16 %v2477
    %v2613 = vunpack.c.l.b16 %v2478
    %v2614 = vunpack.c.l.b16 %v2479
    %v2615 = vunpack.c.l.b16 %v2480
    %v2616 = vunpack.c.l.b16 %v2481
    %v2617 = vunpack.c.l.b16 %v2482
    %v2618 = vunpack.c.l.b16 %v2483
    %v2619 = vunpack.c.l.b16 %v2484
    %v2620 = vunpack.c.l.b16 %v2485
    %v2621 = vunpack.c.l.b16 %v2486
    %v2622 = vunpack.c.l.b16 %v2487
    %v2623 = vunpack.c.l.b16 %v2488
    %v2624 = vunpack.c.l.b16 %v2489
    %v2625 = vunpack.c.l.b16 %v2490
    %v2626 = vunpack.c.l.b16 %v2491
    %v2627 = vunpack.c.l.b16 %v2492
    %v2628 = vunpack.c.l.b16 %v2493
    %v2629 = vunpack.c.l.b16 %v2494
    %v2630 = vunpack.c.l.b16 %v2495
    %v2631 = vunpack.c.l.b16 %v2496
    %v2632 = vunpack.c.l.b16 %v2497
    %v2633 = vunpack.c.l.b16 %v2498
    %v2634 = vunpack.c.l.b16 %v2499
    %v2635 = vunpack.c.l.b16 %v2500
    %v2636 = vunpack.c.l.b16 %v2501
    %v2637 = vunpack.c.l.b16 %v2502
    %v2638 = vunpack.c.l.b16 %v2503
    %v2639 = vunpack.c.l.b16 %v2504
    %v2640 = vunpack.c.l.b16 %v2505
    %v2641 = vunpack.c.l.b16 %v2506
    %v2642 = vunpack.c.l.b16 %v2507
    %v2643 = vunpack.c.l.b16 %v2508
    %v2644 = vunpack.c.l.b16 %v2509
    %v2645 = vunpack.c.l.b16 %v2510
    %v2646 = vunpack.c.l.b16 %v2511
    %v2647 = vunpack.c.l.b16 %v2512
    %v2648 = vunpack.c.l.b16 %v2513
    %v2649 = vunpack.c.l.b16 %v2514
    %v2650 = vunpack.c.l.b16 %v2515
    %v2651 = vunpack.c.l.b16 %v2516
    %v2652 = vunpack.c.l.b16 %v2517
    %v2653 = vunpack.c.l.b16 %v2518
    %v2654 = vunpack.c.l.b16 %v2519
    %v2655 = vunpack.c.l.b16 %v2520
    %v2656 = vunpack.c.l.b16 %v2521
    %v2657 = vunpack.c.l.b16 %v2522
    %v2658 = vunpack.c.l.b16 %v2523
    %v2659 = vunpack.c.l.b16 %v2524
    %v2660 = vunpack.c.l.b16 %v2525
    %v2661 = vunpack.c.l.b16 %v2526
    %v2662 = vunpack.c.l.b16 %v2527
    %v2663 = vunpack.c.l.b16 %v2528
    %v2664 = vunpack.c.l.b16 %v2529
    %v2665 = vunpack.c.l.b16 %v2530
    %v2666 = vunpack.c.l.b16 %v2531
    %v2667 = vunpack.c.l.b16 %v2532
    %v2668 = vunpack.c.l.b16 %v2533
    %v2669 = vunpack.c.l.b16 %v2534
    %v2670 = vpack.c.b16 %v2607, %v2606
    %v2671 = vpack.c.b16 %v2609, %v2608
    %v2672 = vpack.c.b16 %v2611, %v2610
    %v2673 = vpack.c.b16 %v2613, %v2612
    %v2674 = vpack.c.b16 %v2615, %v2614
    %v2675 = vpack.c.b16 %v2617, %v2616
    %v2676 = vpack.c.b16 %v2619, %v2618
    %v2677 = vpack.c.b16 %v2621, %v2620
    %v2678 = vpack.c.b16 %v2623, %v2622
    %v2679 = vpack.c.b16 %v2625, %v2624
    %v2680 = vpack.c.b16 %v2627, %v2626
    %v2681 = vpack.c.b16 %v2629, %v2628
    %v2682 = vpack.c.b16 %v2631, %v2630
    %v2683 = vpack.c.b16 %v2633, %v2632
    %v2684 = vpack.c.b16 %v2635, %v2634
    %v2685 = vpack.c.b16 %v2637, %v2636
    %v2686 = vpack.c.b16 %v2639, %v2638
    %v2687 = vpack.c.b16 %v2641, %v2640
    %v2688 = vpack.c.b16 %v2643, %v2642
    %v2689 = vpack.c.b16 %v2645, %v2644
    %v2690 = vpack.c.b16 %v2647, %v2646
    %v2691 = vpack.c.b16 %v2649, %v2648
    %v2692 = vpack.c.b16 %v2651, %v2650
    %v2693 = vpack.c.b16 %v2653, %v2652
    %v2694 = vpack.c.b16 %v2655, %v2654
    %v2695 = vpack.c.b16 %v2657, %v2656
    %v2696 = vpack.c.b16 %v2659, %v2658
    %v2697 = vpack.c.b16 %v2661, %v2660
    %v2698 = vpack.c.b16 %v2663, %v2662
    %v2699 = vpack.c.b16 %v2665, %v2664
    %v2700 = vpack.c.b16 %v2667, %v2666
    %v2701 = vpack.c.b16 %v2669, %v2668
    %2734 = vmatprep.subr.bf16.mxu0 0
    %2735 = vmatpush1.bf16.msra.mxu0 %v2670
    %2736 = vmatprep.subr.bf16.mxu0 0
    %2737 = vmatpush1.bf16.msra.mxu0 %v2671
    %2738 = vmatprep.subr.bf16.mxu0 0
    %2739 = vmatpush1.bf16.msra.mxu0 %v2672
    %2740 = vmatprep.subr.bf16.mxu0 0
    %2741 = vmatpush1.bf16.msra.mxu0 %v2673
    %2742 = vmatprep.subr.bf16.mxu0 0
    %2743 = vmatpush1.bf16.msra.mxu0 %v2674
    %2744 = vmatprep.subr.bf16.mxu0 0
    %2745 = vmatpush1.bf16.msra.mxu0 %v2675
    %2746 = vmatprep.subr.bf16.mxu0 0
    %2747 = vmatpush1.bf16.msra.mxu0 %v2676
    %2748 = vmatprep.subr.bf16.mxu0 0
    %2749 = vmatpush1.bf16.msra.mxu0 %v2677
    %2750 = vmatprep.subr.bf16.mxu0 0
    %2751 = vmatpush1.bf16.msra.mxu0 %v2678
    %2752 = vmatprep.subr.bf16.mxu0 0
    %2753 = vmatpush1.bf16.msra.mxu0 %v2679
    %2754 = vmatprep.subr.bf16.mxu0 0
    %2755 = vmatpush1.bf16.msra.mxu0 %v2680
    %2756 = vmatprep.subr.bf16.mxu0 0
    %2757 = vmatpush1.bf16.msra.mxu0 %v2681
    %2758 = vmatprep.subr.bf16.mxu0 0
    %2759 = vmatpush1.bf16.msra.mxu0 %v2682
    %2760 = vmatprep.subr.bf16.mxu0 0
    %2761 = vmatpush1.bf16.msra.mxu0 %v2683
    %2762 = vmatprep.subr.bf16.mxu0 0
    %2763 = vmatpush1.bf16.msra.mxu0 %v2684
    %2764 = vmatprep.subr.bf16.mxu0 0
    %2765 = vmatpush1.bf16.msra.mxu0 %v2685
    %2766 = vmatprep.mubr.bf16.mxu0 %v2468
    %2767 = vmatmul.mubr.bf16.gmra.mrb[0].mxu0 %v2467
    %v2768 = vpop.f32.mrb[0].mxu0
    %v2769 = vadd.f32 %v2540, %v2768
    %v2770 = vpop.f32.mrb[0].mxu0
    %v2771 = vpop.f32.mrb[0].mxu0
    %v2772 = vpop.f32.mrb[0].mxu0
    %2773 = vdwg.mxu0
    %2774 = vmatprep.subr.bf16.mxu0 0
    %2775 = vmatpush1.bf16.msra.mxu0 %v2686
    %2776 = vmatprep.subr.bf16.mxu0 0
    %2777 = vmatpush1.bf16.msra.mxu0 %v2687
    %2778 = vmatprep.subr.bf16.mxu0 0
    %2779 = vmatpush1.bf16.msra.mxu0 %v2688
    %2780 = vmatprep.subr.bf16.mxu0 0
    %2781 = vmatpush1.bf16.msra.mxu0 %v2689
    %2782 = vmatprep.subr.bf16.mxu0 0
    %2783 = vmatpush1.bf16.msra.mxu0 %v2690
    %2784 = vmatprep.subr.bf16.mxu0 0
    %2785 = vmatpush1.bf16.msra.mxu0 %v2691
    %2786 = vmatprep.subr.bf16.mxu0 0
    %2787 = vmatpush1.bf16.msra.mxu0 %v2692
    %2788 = vmatprep.subr.bf16.mxu0 0
    %2789 = vmatpush1.bf16.msra.mxu0 %v2693
    %2790 = vmatprep.subr.bf16.mxu0 0
    %2791 = vmatpush1.bf16.msra.mxu0 %v2694
    %2792 = vmatprep.subr.bf16.mxu0 0
    %2793 = vmatpush1.bf16.msra.mxu0 %v2695
    %2794 = vmatprep.subr.bf16.mxu0 0
    %2795 = vmatpush1.bf16.msra.mxu0 %v2696
    %2796 = vmatprep.subr.bf16.mxu0 0
    %2797 = vmatpush1.bf16.msra.mxu0 %v2697
    %2798 = vmatprep.subr.bf16.mxu0 0
    %2799 = vmatpush1.bf16.msra.mxu0 %v2698
    %2800 = vmatprep.subr.bf16.mxu0 0
    %2801 = vmatpush1.bf16.msra.mxu0 %v2699
    %2802 = vmatprep.subr.bf16.mxu0 0
    %2803 = vmatpush1.bf16.msra.mxu0 %v2700
    %2804 = vmatprep.subr.bf16.mxu0 0
    %2805 = vmatpush1.bf16.msra.mxu0 %v2701
    %2806 = vmatprep.mubr.bf16.mxu0 %v2470
    %2807 = vmatmul.mubr.bf16.gmra.mrb[0].mxu0 %v2469
    %v2808 = vpop.f32.mrb[0].mxu0
    %v2809 = vadd.f32 %v2769, %v2808
    %v2810 = vpop.f32.mrb[0].mxu0
    %v2811 = vpop.f32.mrb[0].mxu0
    %v2812 = vpop.f32.mrb[0].mxu0
    %2813 = vdwg.mxu0
    %2814 = vst [vmem:[#allocation11] sm:$0xff] %v2809
    // Predicated region
    $region42: #{tpu_custom_call.1} parent=1 // pred_check
      _
    $region43: #{tpu_custom_call.1} parent=1 // pred_check_branch
      %2816 = sbr.rel (0) target = $region45
    $region44: #{tpu_custom_call.1} parent=1 // pred_region
      %s2818 = ssub.s32 128, 128
      %2819 = vsyncadd [#allocation4], %s2818
      %s2821 = sshll.u32 [#allocation11], 4
      %s2822 = int_to_ptr.vmem [resolvable:$true] %s2821
      %2824 = dma.vmem_to_hbm [thread:$0]  %s2822, 128, %s5, [#allocation4]
    $region45: #{tpu_custom_call.1} parent=1 // pred_fallthru
      _
    // Predicated region
    $region46: #{tpu_custom_call.1} parent=1 // pred_check
      _
    $region47: #{tpu_custom_call.1} parent=1 // pred_check_branch
      %2826 = sbr.rel (0) target = $region49
    $region48: #{tpu_custom_call.1} parent=1 // pred_region
      %s2828 = ssub.s32 512, 512
      %2829 = vsyncadd [#allocation13], %s2828
      %s2831 = sshll.u32 [#allocation12], 4
      %s2832 = int_to_ptr.vmem [resolvable:$true] %s2831
      %2834 = dma.vmem_to_hbm [thread:$0]  %s2832, 512, %s6, [#allocation13]
    $region49: #{tpu_custom_call.1} parent=1 // pred_fallthru
      _
    // Predicated region
    $region50: #{tpu_custom_call.1} parent=1 // pred_check
      _
    $region51: #{tpu_custom_call.1} parent=1 // pred_check_branch
      %2836 = sbr.rel (0) target = $region53
    $region52: #{tpu_custom_call.1} parent=1 // pred_region
      %2837 = dma.done [#allocation4], 128
    $region53: #{tpu_custom_call.1} parent=1 // pred_fallthru
      _
    // Predicated region
    $region54: #{tpu_custom_call.1} parent=1 // pred_check
      _
    $region55: #{tpu_custom_call.1} parent=1 // pred_check_branch
      %2839 = sbr.rel (0) target = $region57
    $region56: #{tpu_custom_call.1} parent=1 // pred_region
      %2840 = dma.done [#allocation13], 512
    $region57: #{tpu_custom_call.1} parent=1 // pred_fallthru
      _
    %2841 = vsyncpa [#allocation3], 1
    %2842 = vsyncpa [#allocation6], 1
    %2843 = vsyncpa [#allocation9], 1
    %2844 = vsyncpa [#allocation4], 1
    %2845 = vsyncpa [#allocation13], 1

</llo_original>
